<compile_context>
chip_gen: v5e
topology: v5e:2x2
jax: 0.10.0
libtpu: 0.0.40
codegen_flags: <defaults>
</compile_context>

<pallas_src>
import math
from functools import partial

import jax
import jax.numpy as jnp
from jax import lax
from jax.experimental import pallas as pl
from jax.experimental.pallas import tpu as pltpu

_VMEM_LIMIT = 32 * 1024 * 1024  # explicit scoped-VMEM budget (fits v5e/v6e/v7x)


# ---------------------------------------------------------------------------
# Kernel 1: rows of  LayerNorm1(x) @ W_qkv + b_qkv   (norm1 + qkv projection)
# ---------------------------------------------------------------------------
def _ln_qkv_kernel(x_ref, g_ref, b_ref, w_ref, bias_ref, o_ref, *, eps):
    x = x_ref[...].astype(jnp.float32)                       # (TR, C)
    mu = jnp.mean(x, axis=-1, keepdims=True)
    var = jnp.mean(jnp.square(x - mu), axis=-1, keepdims=True)
    xn = (x - mu) * lax.rsqrt(var + eps)
    xn = xn * g_ref[...] + b_ref[...]
    # bf16 MXU operands, f32 accumulation
    y = jnp.dot(xn.astype(jnp.bfloat16), w_ref[...],
                preferred_element_type=jnp.float32) + bias_ref[...]
    o_ref[...] = y.astype(o_ref.dtype)


# ---------------------------------------------------------------------------
# Kernel 2: both Difference_Modules (D1 + D2) fused, for one block of the
# flattened (batch*head) axis.  Params for D1/D2 are stacked on a leading
# axis of size 2; static index m selects the module.
# ---------------------------------------------------------------------------
def _fused_diff_kernel(qv_ref, ki_ref, vi_ref, qi_ref, kv_ref, vv_ref,
                       wd_ref, bd_ref, lng_ref, lnb_ref,
                       w1_ref, b1_ref, w2_ref, b2_ref,
                       o_ref, *, scale, eps):
    f32, bf16 = jnp.float32, jnp.bfloat16

    # TODO(synk): for very large N (>~2k) add a kv-block grid axis with
    # online-softmax accumulation so the (N, N) score tile is never fully
    # materialized (v7x 64 MiB VMEM budget); demo N fits comfortably.
    def diff(q, k, v, m):
        tg, n, hd = q.shape
        qf = q.astype(f32)
        # s = q @ k^T * scale : contract last dims of BOTH operands (no k.T)
        s = lax.dot_general(q, k, (((2,), (2,)), ((0,), (0,))),
                            preferred_element_type=f32) * scale        # (tg,n,n)
        # softmax, f32 stats, EUP reciprocal
        mx = jnp.max(s, axis=-1, keepdims=True)
        e = jnp.exp(s - mx)
        p = e * pl.reciprocal(jnp.sum(e, axis=-1, keepdims=True), approx=True)
        # attn @ v
        av = lax.dot_general(p.astype(bf16), v, (((2,), (1,)), ((0,), (0,))),
                             preferred_element_type=f32)               # (tg,n,hd)
        # dif_proj(v - attn)
        d = (v.astype(f32) - av).astype(bf16).reshape(tg * n, hd)
        v1 = jnp.dot(d, wd_ref[m], preferred_element_type=f32) + bd_ref[m]
        v1 = v1.reshape(tg, n, hd)
        # v_new = s @ v1 + q    (reuses the unnormalized scores, as in PyTorch)
        v_new = lax.dot_general(s.astype(bf16), v1.astype(bf16),
                                (((2,), (1,)), ((0,), (0,))),
                                preferred_element_type=f32) + qf
        # LayerNorm -> MLP (fc1 -> exact GELU -> fc2) -> +residual, all f32 stats
        x = v_new.reshape(tg * n, hd)
        mu = jnp.mean(x, axis=-1, keepdims=True)
        var = jnp.mean(jnp.square(x - mu), axis=-1, keepdims=True)
        xn = (x - mu) * lax.rsqrt(var + eps)
        xn = xn * lng_ref[m] + lnb_ref[m]
        h = jnp.dot(xn.astype(bf16), w1_ref[m],
                    preferred_element_type=f32) + b1_ref[m]
        h = 0.5 * h * (1.0 + lax.erf(h * (1.0 / math.sqrt(2.0))))  # exact GELU
        mlp = jnp.dot(h.astype(bf16), w2_ref[m],
                      preferred_element_type=f32) + b2_ref[m]
        return (mlp + x).reshape(tg, n, hd)

    out = diff(qv_ref[...], ki_ref[...], vi_ref[...], 0) \
        + diff(qi_ref[...], kv_ref[...], vv_ref[...], 1)
    o_ref[...] = out.astype(o_ref.dtype)


# ---------------------------------------------------------------------------
# Wrapper: full Fusion forward
# ---------------------------------------------------------------------------
def fusion_forward(x_vis, x_inf, params, *, eps=1e-5, row_block=256, bh_block=8):
    B, N, C = x_vis.shape
    hd = params["wd"].shape[-1]
    H = C // hd
    hidden = params["w1"].shape[-1]
    assert H * hd == C

    # ---- stage 1: norm1 + qkv projection for both streams in one call ------
    xs = jnp.concatenate([x_vis, x_inf], axis=0).reshape(2 * B * N, C)
    R = 2 * B * N
    row_block = min(row_block, R)
    assert R % row_block == 0 and row_block % 8 == 0

    qkv = pl.pallas_call(
        partial(_ln_qkv_kernel, eps=eps),
        out_shape=jax.ShapeDtypeStruct((R, 3 * C), jnp.bfloat16),
        grid_spec=pltpu.PrefetchScalarGridSpec(
            num_scalar_prefetch=0,
            grid=(R // row_block,),
            in_specs=[
                pl.BlockSpec((row_block, C), lambda r: (r, 0)),
                pl.BlockSpec((1, C), lambda r: (0, 0)),
                pl.BlockSpec((1, C), lambda r: (0, 0)),
                pl.BlockSpec((C, 3 * C), lambda r: (0, 0)),
                pl.BlockSpec((1, 3 * C), lambda r: (0, 0)),
            ],
            out_specs=pl.BlockSpec((row_block, 3 * C), lambda r: (r, 0)),
        ),
        compiler_params=pltpu.CompilerParams(
            dimension_semantics=("parallel",),
            vmem_limit_bytes=_VMEM_LIMIT),
    )(xs, params["ln1_g"], params["ln1_b"],
      params["w_qkv"].astype(jnp.bfloat16), params["b_qkv"])

    # split heads -> per-stream q/k/v of shape (B*H, N, hd), bf16
    qkv = qkv.reshape(2, B, N, 3, H, hd).transpose(3, 0, 1, 4, 2, 5)  # (3,2,B,H,N,hd)
    q, k, v = qkv[0], qkv[1], qkv[2]
    G = B * H
    q_vis, q_inf = q[0].reshape(G, N, hd), q[1].reshape(G, N, hd)
    k_vis, k_inf = k[0].reshape(G, N, hd), k[1].reshape(G, N, hd)
    v_vis, v_inf = v[0].reshape(G, N, hd), v[1].reshape(G, N, hd)

    # ---- stage 2: D1 + D2 fused, batched over blocks of (batch*head) -------
    bh_block = min(bh_block, G)
    assert G % bh_block == 0
    scale = hd ** (-0.5)

    bspec = pl.BlockSpec((bh_block, N, hd), lambda g: (g, 0, 0))
    wfull = lambda shape: pl.BlockSpec(shape, lambda g: (0,) * len(shape))

    fused = pl.pallas_call(
        partial(_fused_diff_kernel, scale=scale, eps=eps),
        out_shape=jax.ShapeDtypeStruct((G, N, hd), jnp.float32),
        grid_spec=pltpu.PrefetchScalarGridSpec(
            num_scalar_prefetch=0,
            grid=(G // bh_block,),
            in_specs=[bspec] * 6 + [
                wfull((2, hd, hd)),       # dif_proj W   (bf16)
                wfull((2, hd)),           # dif_proj b
                wfull((2, hd)),           # norm gamma
                wfull((2, hd)),           # norm beta
                wfull((2, hd, hidden)),   # fc1 W        (bf16)
                wfull((2, hidden)),       # fc1 b
                wfull((2, hidden, hd)),   # fc2 W        (bf16)
                wfull((2, hd)),           # fc2 b
            ],
            out_specs=bspec,
        ),
        compiler_params=pltpu.CompilerParams(
            dimension_semantics=("parallel",),
            vmem_limit_bytes=_VMEM_LIMIT),
    )(q_vis, k_inf, v_inf, q_inf, k_vis, v_vis,
      params["wd"].astype(jnp.bfloat16), params["bd"],
      params["ln_g"], params["ln_b"],
      params["w1"].astype(jnp.bfloat16), params["b1"],
      params["w2"].astype(jnp.bfloat16), params["b2"])

    # v_fuse.transpose(1, 2).reshape(B, N, C)
    return fused.reshape(B, H, N, hd).transpose(0, 2, 1, 3).reshape(B, N, C)


# ---------------------------------------------------------------------------
# Pure-JAX f32 reference mirroring the PyTorch forward
# ---------------------------------------------------------------------------
def reference(x_vis, x_inf, params, eps=1e-5):
    B, N, C = x_vis.shape
    hd = params["wd"].shape[-1]
    H = C // hd

    def ln(x, g, b):
        mu = x.mean(-1, keepdims=True)
        var = ((x - mu) ** 2).mean(-1, keepdims=True)
        return (x - mu) / jnp.sqrt(var + eps) * g + b

    def qkv_split(x):
        y = ln(x, params["ln1_g"], params["ln1_b"]) @ params["w_qkv"] + params["b_qkv"]
        y = y.reshape(B, N, 3, H, hd).transpose(2, 0, 3, 1, 4)   # (3,B,H,N,hd)
        return y[0], y[1], y[2]

    def diff(q, k, v, m):
        scale = hd ** (-0.5)
        s = jnp.einsum("bhnc,bhmc->bhnm", q, k) * scale
        attn = jax.nn.softmax(s, axis=-1)
        av = jnp.einsum("bhnm,bhmc->bhnc", attn, v)
        v1 = (v - av) @ params["wd"][m] + params["bd"][m]
        v_new = jnp.einsum("bhnm,bhmc->bhnc", s, v1) + q
        xn = ln(v_new, params["ln_g"][m], params["ln_b"][m])
        h = xn @ params["w1"][m] + params["b1"][m]
        h = 0.5 * h * (1.0 + lax.erf(h / jnp.sqrt(2.0)))
        return h @ params["w2"][m] + params["b2"][m] + v_new

    qv, kv_, vv = qkv_split(x_vis)
    qi, ki, vi = qkv_split(x_inf)
    fuse = diff(qv, ki, vi, 0) + diff(qi, kv_, vv, 1)            # (B,H,N,hd)
    return fuse.transpose(0, 2, 1, 3).reshape(B, N, C)


def init_params(key, dim, num_heads, mlp_ratio=4.0):
    hd = dim // num_heads
    hidden = int(hd * mlp_ratio)
    ks = jax.random.split(key, 8)

    def lin(k, fan_in, shape):
        bound = 1.0 / math.sqrt(fan_in)
        return jax.random.uniform(k, shape, jnp.float32, -bound, bound)

    return {
        # Fun.norm1 / Fun.qkv
        "ln1_g": jnp.ones((1, dim), jnp.float32),
        "ln1_b": jnp.zeros((1, dim), jnp.float32),
        "w_qkv": lin(ks[0], dim, (dim, 3 * dim)),
        "b_qkv": lin(ks[1], dim, (1, 3 * dim)),
        # Difference_Module D1 / D2 (stacked on a leading axis of size 2)
        "wd": lin(ks[2], hd, (2, hd, hd)),
        "bd": lin(ks[3], hd, (2, hd)),
        "ln_g": jnp.ones((2, hd), jnp.float32),
        "ln_b": jnp.zeros((2, hd), jnp.float32),
        "w1": lin(ks[4], hd, (2, hd, hidden)),
        "b1": lin(ks[5], hd, (2, hidden)),
        "w2": lin(ks[6], hidden, (2, hidden, hd)),
        "b2": lin(ks[7], hidden, (2, hd)),
    }


if __name__ == "__main__":
    # Small demo shapes consistent with Fun/Fusion: x_vis, x_inf are (B, N, C)
    # with C = num_heads * head_dim.  head_dim = 128 keeps every tile
    # (8,128)-aligned and lane-dense per the perf review; kernels are generic.
    B, N, HEADS, HEAD_DIM = 2, 32, 2, 128
    C = HEADS * HEAD_DIM

    key = jax.random.PRNGKey(0)
    k1, k2, kp = jax.random.split(key, 3)
    x_vis = jax.random.normal(k1, (B, N, C), jnp.float32)
    x_inf = jax.random.normal(k2, (B, N, C), jnp.float32)
    params = init_params(kp, C, HEADS)

    # row_block / bh_block chosen so both grids have >1 "parallel" step
    # (keeps both v7x TensorCores busy even at this tiny demo size).
    out = fusion_forward(x_vis, x_inf, params, row_block=64, bh_block=2)
    out = jax.block_until_ready(out)

    ref = reference(x_vis, x_inf, params)
    assert out.shape == (B, N, C)
    err = float(jnp.max(jnp.abs(out - ref)))
    # bf16 MXU operands (f32 accumulation / statistics) -> loosened tolerance.
    assert jnp.allclose(out, ref, atol=5e-2, rtol=5e-2), err
    print("KERNEL_OK")
</pallas_src>

<mosaic_0001>
module attributes {stable_mosaic.version = 11 : i64} {
  func.func @_ln_qkv_kernel(%arg0: i32, %arg1: memref<64x256xf32, #tpu.memory_space<vmem>>, %arg2: memref<1x256xf32, #tpu.memory_space<vmem>>, %arg3: memref<1x256xf32, #tpu.memory_space<vmem>>, %arg4: memref<256x768xbf16, #tpu.memory_space<vmem>>, %arg5: memref<1x768xf32, #tpu.memory_space<vmem>>, %arg6: memref<64x768xbf16, #tpu.memory_space<vmem>>) attributes {dimension_semantics = [#tpu.dimension_semantics<parallel>], iteration_bounds = array<i64: 2>, scalar_prefetch = 0 : i64, scratch_operands = 0 : i64, tpu.core_type = #tpu.core_type<tc>, window_params = [{transform_indices = @transform_0, window_bounds = array<i64: 64, 256>}, {pipeline_mode = #tpu.pipeline_mode<synchronous>, transform_indices = @transform_1, window_bounds = array<i64: 1, 256>}, {pipeline_mode = #tpu.pipeline_mode<synchronous>, transform_indices = @transform_2, window_bounds = array<i64: 1, 256>}, {pipeline_mode = #tpu.pipeline_mode<synchronous>, transform_indices = @transform_3, window_bounds = array<i64: 256, 768>}, {pipeline_mode = #tpu.pipeline_mode<synchronous>, transform_indices = @transform_4, window_bounds = array<i64: 1, 768>}, {transform_indices = @transform_5, window_bounds = array<i64: 64, 768>}]} {
    %c0 = arith.constant 0 : index
    %c0_0 = arith.constant 0 : index
    %0 = vector.load %arg1[%c0, %c0_0] : memref<64x256xf32, #tpu.memory_space<vmem>>, vector<64x256xf32>
    %cst = arith.constant dense<0.000000e+00> : vector<64xf32>
    %1 = vector.multi_reduction <add>, %0, %cst [1] : vector<64x256xf32> to vector<64xf32>
    %2 = vector.shape_cast %1 : vector<64xf32> to vector<64x1xf32>
    %cst_1 = arith.constant 2.560000e+02 : f32
    %3 = vector.broadcast %cst_1 : f32 to vector<64x1xf32>
    %4 = arith.divf %2, %3 : vector<64x1xf32>
    %5 = vector.broadcast %4 : vector<64x1xf32> to vector<64x256xf32>
    %6 = arith.subf %0, %5 : vector<64x256xf32>
    %7 = arith.mulf %6, %6 : vector<64x256xf32>
    %cst_2 = arith.constant dense<0.000000e+00> : vector<64xf32>
    %8 = vector.multi_reduction <add>, %7, %cst_2 [1] : vector<64x256xf32> to vector<64xf32>
    %9 = vector.shape_cast %8 : vector<64xf32> to vector<64x1xf32>
    %cst_3 = arith.constant 2.560000e+02 : f32
    %10 = vector.broadcast %cst_3 : f32 to vector<64x1xf32>
    %11 = arith.divf %9, %10 : vector<64x1xf32>
    %12 = vector.broadcast %4 : vector<64x1xf32> to vector<64x256xf32>
    %13 = arith.subf %0, %12 : vector<64x256xf32>
    %cst_4 = arith.constant 9.99999974E-6 : f32
    %14 = vector.broadcast %cst_4 : f32 to vector<64x1xf32>
    %15 = arith.addf %11, %14 : vector<64x1xf32>
    %16 = math.rsqrt %15 : vector<64x1xf32>
    %17 = vector.broadcast %16 : vector<64x1xf32> to vector<64x256xf32>
    %18 = arith.mulf %13, %17 : vector<64x256xf32>
    %c0_5 = arith.constant 0 : index
    %c0_6 = arith.constant 0 : index
    %19 = vector.load %arg2[%c0_5, %c0_6] : memref<1x256xf32, #tpu.memory_space<vmem>>, vector<1x256xf32>
    %20 = vector.broadcast %19 : vector<1x256xf32> to vector<64x256xf32>
    %21 = arith.mulf %18, %20 : vector<64x256xf32>
    %c0_7 = arith.constant 0 : index
    %c0_8 = arith.constant 0 : index
    %22 = vector.load %arg3[%c0_7, %c0_8] : memref<1x256xf32, #tpu.memory_space<vmem>>, vector<1x256xf32>
    %23 = vector.broadcast %22 : vector<1x256xf32> to vector<64x256xf32>
    %24 = arith.addf %21, %23 : vector<64x256xf32>
    %25 = arith.truncf %24 : vector<64x256xf32> to vector<64x256xbf16>
    %c0_9 = arith.constant 0 : index
    %c0_10 = arith.constant 0 : index
    %26 = vector.load %arg4[%c0_9, %c0_10] : memref<256x768xbf16, #tpu.memory_space<vmem>>, vector<256x768xbf16>
    %cst_11 = arith.constant dense<0.000000e+00> : vector<64x768xf32>
    %27 = tpu.matmul %25, %26, %cst_11 {dimension_numbers = #tpu.dot_dimension_numbers<[1], [0], [0], [1], [0, 0, 1, 1], [], []>} : vector<64x256xbf16>, vector<256x768xbf16>, vector<64x768xf32> -> vector<64x768xf32>
    %c0_12 = arith.constant 0 : index
    %c0_13 = arith.constant 0 : index
    %28 = vector.load %arg5[%c0_12, %c0_13] : memref<1x768xf32, #tpu.memory_space<vmem>>, vector<1x768xf32>
    %29 = vector.broadcast %28 : vector<1x768xf32> to vector<64x768xf32>
    %30 = arith.addf %27, %29 : vector<64x768xf32>
    %31 = arith.truncf %30 : vector<64x768xf32> to vector<64x768xbf16>
    %c0_14 = arith.constant 0 : index
    %c0_15 = arith.constant 0 : index
    %32 = vector.load %arg6[%c0_14, %c0_15] : memref<64x768xbf16, #tpu.memory_space<vmem>>, vector<64x768xbf16>
    tpu.vector_store %arg6[%c0_14, %c0_15], %31 {strides = array<i32>} : memref<64x768xbf16, #tpu.memory_space<vmem>>, vector<64x768xbf16>,
    return
  }
  func.func @transform_0(%arg0: i32) -> (i32, i32) {
    %c0_i32 = arith.constant 0 : i32
    %c0_i32_0 = arith.constant 0 : i32
    return %arg0, %c0_i32 : i32, i32
  }
  func.func @transform_1(%arg0: i32) -> (i32, i32) {
    %c0_i32 = arith.constant 0 : i32
    %c0_i32_0 = arith.constant 0 : i32
    %c0_i32_1 = arith.constant 0 : i32
    return %c0_i32, %c0_i32_0 : i32, i32
  }
  func.func @transform_2(%arg0: i32) -> (i32, i32) {
    %c0_i32 = arith.constant 0 : i32
    %c0_i32_0 = arith.constant 0 : i32
    %c0_i32_1 = arith.constant 0 : i32
    return %c0_i32, %c0_i32_0 : i32, i32
  }
  func.func @transform_3(%arg0: i32) -> (i32, i32) {
    %c0_i32 = arith.constant 0 : i32
    %c0_i32_0 = arith.constant 0 : i32
    %c0_i32_1 = arith.constant 0 : i32
    return %c0_i32, %c0_i32_0 : i32, i32
  }
  func.func @transform_4(%arg0: i32) -> (i32, i32) {
    %c0_i32 = arith.constant 0 : i32
    %c0_i32_0 = arith.constant 0 : i32
    %c0_i32_1 = arith.constant 0 : i32
    return %c0_i32, %c0_i32_0 : i32, i32
  }
  func.func @transform_5(%arg0: i32) -> (i32, i32) {
    %c0_i32 = arith.constant 0 : i32
    %c0_i32_0 = arith.constant 0 : i32
    return %arg0, %c0_i32 : i32, i32
  }
}

</mosaic_0001>

<llo_original>
// kernel: tpu_custom_call.1
$region0: #{tpu_custom_call.1}
  #allocation0 [shape = 'u32[]', space=smem, size = 0x4, offset = 0x4, fixed_abs, tag = 'smem constant byte address 0x4 - core index']
  #allocation1 [shape = 'u32[72,128]{1,0:T(1,128)}', space=vmem, size = 0x9000, scoped, tag = 'internal scratch']
  %s0 = inlined_call_operand.hbm [shape: f32[128,256], index: 0, kind: input, shape index: {}]
  %s1 = inlined_call_operand.hbm [shape: f32[1,256], index: 1, kind: input, shape index: {}]
  %s2 = inlined_call_operand.hbm [shape: f32[1,256], index: 2, kind: input, shape index: {}]
  %s3 = inlined_call_operand.hbm [shape: bf16[256,768], index: 3, kind: input, shape index: {}]
  %s4 = inlined_call_operand.hbm [shape: f32[1,768], index: 4, kind: input, shape index: {}]
  %s5 = inlined_call_operand.hbm [shape: bf16[128,768], index: 5, kind: output, shape index: {}]
  %s6 = sld [smem:[#allocation0]]
  $region73: #{tpu_custom_call.1} parent=0
    _
  %s8 = ssub.s32 1, %s6
  %s9 = scalar_select 0, %s8, %s6
  $region1: #{tpu_custom_call.1} parent=0
    #allocation2 [shape = 'u8[131072]{0}', space=vmem, size = 0x20000, scoped, tag = 'input window, operand 0']
    #allocation3 [shape = 's32[2]{0}', space=sflag, size = 0x8, scoped, tag = 'scoped memory for tpu_custom_call.1']
    #allocation4 [shape = 's32[2]{0}', space=sflag, size = 0x8, scoped, tag = 'scoped memory for tpu_custom_call.1']
    #allocation5 [shape = 'u8[1024]{0}', space=vmem, size = 0x400, scoped, tag = 'input window, operand 1, single buffered']
    #allocation6 [shape = 's32[1]{0}', space=sflag, size = 0x4, scoped, tag = 'scoped memory for tpu_custom_call.1']
    #allocation7 [shape = 'u8[1024]{0}', space=vmem, size = 0x400, scoped, tag = 'input window, operand 2, single buffered']
    #allocation8 [shape = 'u8[393216]{0}', space=vmem, size = 0x60000, scoped, tag = 'input window, operand 3, single buffered']
    #allocation9 [shape = 's32[1]{0}', space=sflag, size = 0x4, scoped, tag = 'scoped memory for tpu_custom_call.1']
    #allocation10 [shape = 'u8[3072]{0}', space=vmem, size = 0xc00, scoped, tag = 'input window, operand 4, single buffered']
    #allocation11 [shape = 'u8[196608]{0}', space=vmem, size = 0x30000, scoped, tag = 'output window, operand 0']
    %10 = vsyncpa [#allocation3], 0
    %s11 = scalar_lea.sflag [#allocation3], 1
    %12 = vsyncpa %s11, 0
    %13 = vsyncpa [#allocation6], 0
    %14 = vsyncpa [#allocation9], 0
    %15 = vsyncpa [#allocation4], 0
    %s16 = scalar_lea.sflag [#allocation4], 1
    %17 = vsyncpa %s16, 0
    loop: start=0, step=1, limit=4
    $region2: #{tpu_custom_call.1} parent=1 // loop_pre_header
      _
    $region3: #{tpu_custom_call.1} parent=1 // loop_header
      %s19 = sphi 0, %s23
      %p20 = scmp.ge.s32.totalorder %s19, 4
      %s29 = sphi 0, %s31
      %s32 = sphi 0, %s29
      %s33 = sphi 0, %s32
      %s49 = sphi 0, %s33
      %s53 = sphi 0, %s53
      %s55 = sphi 0, %s53
      %s56 = sphi 0, %s55
      %s70 = sphi 0, %s56
      %s74 = sphi 0, %s74
      %s76 = sphi 0, %s74
      %s77 = sphi 0, %s76
      %s91 = sphi 0, %s77
      %s95 = sphi 0, %s95
      %s97 = sphi 0, %s95
      %s98 = sphi 0, %s97
      %s112 = sphi 0, %s98
      %s116 = sphi 0, %s116
      %s118 = sphi 0, %s116
      %s119 = sphi 0, %s118
      %s133 = sphi 0, %s119
      %s139 = sphi 0, %s141
      %s142 = sphi 0, %s139
      %s143 = sphi 0, %s142
      %s159 = sphi 0, %s143
    $region4: #{tpu_custom_call.1} parent=1 // loop_header_branch
      %22 = sbr.rel (%p20) target = $region8
    $region5: #{tpu_custom_call.1} parent=1 // loop_body
      %s24 = ssub.s32 %s19, 1
      %s25 = ssub.s32 %s19, 2
      %s26 = sadd.s32 %s19, 1
      %s27 = ssub.s32 %s19, %s26
      %p28 = scmp.eq.s32.totalorder %s27, 0
      %s30 = sadd.s32 %s29, 1
      %s31 = scalar_select %p28, %s29, %s30
      %p34 = pneg %p28
      %p35 = scmp.eq.s32.totalorder %s19, 1
      %p36 = por %p34, %p35
      %p37 = scmp.ne.s32.totalorder %s29, %s32
      %p38 = scmp.eq.s32.totalorder %s19, 0
      %p39 = por %p37, %p38
      %p40 = scmp.ne.s32.totalorder %s29, %s32
      %p41 = scmp.eq.s32.totalorder %s24, 1
      %p42 = por %p40, %p41
      %p43 = scmp.ne.s32.totalorder %s32, %s33
      %p44 = scmp.eq.s32.totalorder %s24, 0
      %p45 = por %p43, %p44
      %p46 = scmp.ne.s32.totalorder %s32, %s33
      %p47 = scmp.eq.s32.totalorder %s25, 1
      %p48 = por %p46, %p47
      %p50 = scmp.ne.s32.totalorder %s33, %s49
      %p51 = scmp.eq.s32.totalorder %s25, 0
      %p52 = por %p50, %p51
      %s54 = sadd.s32 %s53, 1
      %p57 = scmp.eq.s32.totalorder %s19, 1
      %p58 = scmp.ne.s32.totalorder %s53, %s55
      %p59 = scmp.eq.s32.totalorder %s19, 0
      %p60 = por %p58, %p59
      %p61 = scmp.ne.s32.totalorder %s53, %s55
      %p62 = scmp.eq.s32.totalorder %s24, 1
      %p63 = por %p61, %p62
      %p64 = scmp.ne.s32.totalorder %s55, %s56
      %p65 = scmp.eq.s32.totalorder %s24, 0
      %p66 = por %p64, %p65
      %p67 = scmp.ne.s32.totalorder %s55, %s56
      %p68 = scmp.eq.s32.totalorder %s25, 1
      %p69 = por %p67, %p68
      %p71 = scmp.ne.s32.totalorder %s56, %s70
      %p72 = scmp.eq.s32.totalorder %s25, 0
      %p73 = por %p71, %p72
      %s75 = sadd.s32 %s74, 1
      %p78 = scmp.eq.s32.totalorder %s19, 1
      %p79 = scmp.ne.s32.totalorder %s74, %s76
      %p80 = scmp.eq.s32.totalorder %s19, 0
      %p81 = por %p79, %p80
      %p82 = scmp.ne.s32.totalorder %s74, %s76
      %p83 = scmp.eq.s32.totalorder %s24, 1
      %p84 = por %p82, %p83
      %p85 = scmp.ne.s32.totalorder %s76, %s77
      %p86 = scmp.eq.s32.totalorder %s24, 0
      %p87 = por %p85, %p86
      %p88 = scmp.ne.s32.totalorder %s76, %s77
      %p89 = scmp.eq.s32.totalorder %s25, 1
      %p90 = por %p88, %p89
      %p92 = scmp.ne.s32.totalorder %s77, %s91
      %p93 = scmp.eq.s32.totalorder %s25, 0
      %p94 = por %p92, %p93
      %s96 = sadd.s32 %s95, 1
      %p99 = scmp.eq.s32.totalorder %s19, 1
      %p100 = scmp.ne.s32.totalorder %s95, %s97
      %p101 = scmp.eq.s32.totalorder %s19, 0
      %p102 = por %p100, %p101
      %p103 = scmp.ne.s32.totalorder %s95, %s97
      %p104 = scmp.eq.s32.totalorder %s24, 1
      %p105 = por %p103, %p104
      %p106 = scmp.ne.s32.totalorder %s97, %s98
      %p107 = scmp.eq.s32.totalorder %s24, 0
      %p108 = por %p106, %p107
      %p109 = scmp.ne.s32.totalorder %s97, %s98
      %p110 = scmp.eq.s32.totalorder %s25, 1
      %p111 = por %p109, %p110
      %p113 = scmp.ne.s32.totalorder %s98, %s112
      %p114 = scmp.eq.s32.totalorder %s25, 0
      %p115 = por %p113, %p114
      %s117 = sadd.s32 %s116, 1
      %p120 = scmp.eq.s32.totalorder %s19, 1
      %p121 = scmp.ne.s32.totalorder %s116, %s118
      %p122 = scmp.eq.s32.totalorder %s19, 0
      %p123 = por %p121, %p122
      %p124 = scmp.ne.s32.totalorder %s116, %s118
      %p125 = scmp.eq.s32.totalorder %s24, 1
      %p126 = por %p124, %p125
      %p127 = scmp.ne.s32.totalorder %s118, %s119
      %p128 = scmp.eq.s32.totalorder %s24, 0
      %p129 = por %p127, %p128
      %p130 = scmp.ne.s32.totalorder %s118, %s119
      %p131 = scmp.eq.s32.totalorder %s25, 1
      %p132 = por %p130, %p131
      %p134 = scmp.ne.s32.totalorder %s119, %s133
      %p135 = scmp.eq.s32.totalorder %s25, 0
      %p136 = por %p134, %p135
      %s137 = ssub.s32 %s19, %s26
      %p138 = scmp.eq.s32.totalorder %s137, 0
      %s140 = sadd.s32 %s139, 1
      %s141 = scalar_select %p138, %s139, %s140
      %p144 = pneg %p138
      %p145 = scmp.eq.s32.totalorder %s19, 1
      %p146 = por %p144, %p145
      %p147 = scmp.ne.s32.totalorder %s139, %s142
      %p148 = scmp.eq.s32.totalorder %s19, 0
      %p149 = por %p147, %p148
      %p150 = scmp.ne.s32.totalorder %s139, %s142
      %p151 = scmp.eq.s32.totalorder %s24, 1
      %p152 = por %p150, %p151
      %p153 = scmp.ne.s32.totalorder %s142, %s143
      %p154 = scmp.eq.s32.totalorder %s24, 0
      %p155 = por %p153, %p154
      %p156 = scmp.ne.s32.totalorder %s142, %s143
      %p157 = scmp.eq.s32.totalorder %s25, 1
      %p158 = por %p156, %p157
      %p160 = scmp.ne.s32.totalorder %s143, %s159
      %p161 = scmp.eq.s32.totalorder %s25, 0
      %p162 = por %p160, %p161
      %p163 = scmp.le.s32.totalorder 1, %s19
      %p164 = scmp.lt.s32.totalorder %s19, 3
      %p165 = pnand %p163, %p164
      %p166 = pneg %p165
      // Predicated region
      $region9: #{tpu_custom_call.1} parent=5 // pred_check
        _
      $region10: #{tpu_custom_call.1} parent=5 // pred_check_branch
        %168 = sbr.rel (%p165) target = $region12
      $region11: #{tpu_custom_call.1} parent=5 // pred_region
        %s169 = ssub.s32 %s19, 1
        // Predicated region
        $region13: #{tpu_custom_call.1} parent=11 // pred_check
          %p170 = pneg %p66
        $region14: #{tpu_custom_call.1} parent=11 // pred_check_branch
          %172 = sbr.rel (%p170) target = $region16
        $region15: #{tpu_custom_call.1} parent=11 // pred_region
          %174 = vsyncadd [#allocation6], 0
          %s176 = sshll.u32 %s1, 4
          %s177 = int_to_ptr.hbm [resolvable:$true] %s176
          %s178 = sshll.u32 [#allocation5], 4
          %s179 = int_to_ptr.vmem [resolvable:$true] %s178
          %181 = dma.hbm_to_vmem [thread:$0]  %s177, 32, %s179, [#allocation6]
        $region16: #{tpu_custom_call.1} parent=11 // pred_fallthru
          _
        // Predicated region
        $region17: #{tpu_custom_call.1} parent=11 // pred_check
          %p182 = pneg %p87
        $region18: #{tpu_custom_call.1} parent=11 // pred_check_branch
          %184 = sbr.rel (%p182) target = $region20
        $region19: #{tpu_custom_call.1} parent=11 // pred_region
          %186 = vsyncadd [#allocation6], 0
          %s188 = sshll.u32 %s2, 4
          %s189 = int_to_ptr.hbm [resolvable:$true] %s188
          %s190 = sshll.u32 [#allocation7], 4
          %s191 = int_to_ptr.vmem [resolvable:$true] %s190
          %193 = dma.hbm_to_vmem [thread:$0]  %s189, 32, %s191, [#allocation6]
        $region20: #{tpu_custom_call.1} parent=11 // pred_fallthru
          _
        // Predicated region
        $region21: #{tpu_custom_call.1} parent=11 // pred_check
          %p194 = pneg %p108
        $region22: #{tpu_custom_call.1} parent=11 // pred_check_branch
          %196 = sbr.rel (%p194) target = $region24
        $region23: #{tpu_custom_call.1} parent=11 // pred_region
          %198 = vsyncadd [#allocation9], 0
          %s199 = sshll.u32 %s3, 4
          %s200 = int_to_ptr.hbm [resolvable:$true] %s199
          %s201 = sshll.u32 [#allocation8], 4
          %s202 = int_to_ptr.vmem [resolvable:$true] %s201
          %207 = dma.hbm_to_vmem [thread:$0]  %s200, 12288, %s202, [#allocation9], 384, 384, 24
        $region24: #{tpu_custom_call.1} parent=11 // pred_fallthru
          _
        // Predicated region
        $region25: #{tpu_custom_call.1} parent=11 // pred_check
          %p208 = pneg %p129
        $region26: #{tpu_custom_call.1} parent=11 // pred_check_branch
          %210 = sbr.rel (%p208) target = $region28
        $region27: #{tpu_custom_call.1} parent=11 // pred_region
          %212 = vsyncadd [#allocation9], 0
          %s214 = sshll.u32 %s4, 4
          %s215 = int_to_ptr.hbm [resolvable:$true] %s214
          %s216 = sshll.u32 [#allocation10], 4
          %s217 = int_to_ptr.vmem [resolvable:$true] %s216
          %219 = dma.hbm_to_vmem [thread:$0]  %s215, 96, %s217, [#allocation9]
        $region28: #{tpu_custom_call.1} parent=11 // pred_fallthru
          _
      $region12: #{tpu_custom_call.1} parent=5 // pred_fallthru
        _
      %p220 = scmp.lt.s32.totalorder %s19, 2
      // Predicated region
      $region29: #{tpu_custom_call.1} parent=5 // pred_check
        %p221 = pneg %p220
      $region30: #{tpu_custom_call.1} parent=5 // pred_check_branch
        %223 = sbr.rel (%p221) target = $region32
      $region31: #{tpu_custom_call.1} parent=5 // pred_region
        // Predicated region
        $region33: #{tpu_custom_call.1} parent=31 // pred_check
          %p224 = pneg %p39
        $region34: #{tpu_custom_call.1} parent=31 // pred_check_branch
          %226 = sbr.rel (%p224) target = $region36
        $region35: #{tpu_custom_call.1} parent=31 // pred_region
          %s227 = sand.u32 %s29, 1
          %s228 = scalar_lea.sflag [#allocation3], %s227
          %s229 = sand.u32 %s29, 1
          %s230 = smul.addr %s229, 128
          %s231 = scalar_lea.vmem [#allocation2], %s230
          %s232 = smul.u32 8, %s19
          %234 = vsyncadd %s228, 0
          %s235 = smul.addr %s232, 2
          %s236 = smul.addr %s235, 8
          %s237 = scalar_lea.hbm %s0, %s236
          %s238 = sshll.u32 %s237, 4
          %s239 = int_to_ptr.hbm [resolvable:$true] %s238
          %s240 = sshll.u32 %s231, 4
          %s241 = int_to_ptr.vmem [resolvable:$true] %s240
          %246 = dma.hbm_to_vmem [thread:$0]  %s239, 2048, %s241, %s228, 256, 256, 16
        $region36: #{tpu_custom_call.1} parent=31 // pred_fallthru
          _
      $region32: #{tpu_custom_call.1} parent=5 // pred_fallthru
        _
      %p247 = scmp.le.s32.totalorder 1, %s19
      %p248 = scmp.lt.s32.totalorder %s19, 3
      %p249 = pnand %p247, %p248
      %p250 = pneg %p249
      // Predicated region
      $region37: #{tpu_custom_call.1} parent=5 // pred_check
        _
      $region38: #{tpu_custom_call.1} parent=5 // pred_check_branch
        %252 = sbr.rel (%p249) target = $region40
      $region39: #{tpu_custom_call.1} parent=5 // pred_region
        %s253 = ssub.s32 %s19, 1
        %s254 = sand.u32 %s32, 1
        %s255 = scalar_lea.sflag [#allocation3], %s254
        %s256 = sand.u32 %s32, 1
        %s257 = smul.addr %s256, 128
        %s258 = scalar_lea.vmem [#allocation2], %s257
        // Predicated region
        $region41: #{tpu_custom_call.1} parent=39 // pred_check
          %p259 = pneg %p45
        $region42: #{tpu_custom_call.1} parent=39 // pred_check_branch
          %261 = sbr.rel (%p259) target = $region44
        $region43: #{tpu_custom_call.1} parent=39 // pred_region
          %263 = dma.done %s255, 2048
        $region44: #{tpu_custom_call.1} parent=39 // pred_fallthru
          _
        // Predicated region
        $region45: #{tpu_custom_call.1} parent=39 // pred_check
          %p264 = pneg %p66
        $region46: #{tpu_custom_call.1} parent=39 // pred_check_branch
          %266 = sbr.rel (%p264) target = $region48
        $region47: #{tpu_custom_call.1} parent=39 // pred_region
          %268 = dma.done [#allocation6], 32
        $region48: #{tpu_custom_call.1} parent=39 // pred_fallthru
          _
        // Predicated region
        $region49: #{tpu_custom_call.1} parent=39 // pred_check
          %p269 = pneg %p87
        $region50: #{tpu_custom_call.1} parent=39 // pred_check_branch
          %271 = sbr.rel (%p269) target = $region52
        $region51: #{tpu_custom_call.1} parent=39 // pred_region
          %273 = dma.done [#allocation6], 32
        $region52: #{tpu_custom_call.1} parent=39 // pred_fallthru
          _
        // Predicated region
        $region53: #{tpu_custom_call.1} parent=39 // pred_check
          %p274 = pneg %p108
        $region54: #{tpu_custom_call.1} parent=39 // pred_check_branch
          %276 = sbr.rel (%p274) target = $region56
        $region55: #{tpu_custom_call.1} parent=39 // pred_region
          %278 = dma.done [#allocation9], 12288
        $region56: #{tpu_custom_call.1} parent=39 // pred_fallthru
          _
        // Predicated region
        $region57: #{tpu_custom_call.1} parent=39 // pred_check
          %p279 = pneg %p129
        $region58: #{tpu_custom_call.1} parent=39 // pred_check_branch
          %281 = sbr.rel (%p279) target = $region60
        $region59: #{tpu_custom_call.1} parent=39 // pred_region
          %283 = dma.done [#allocation9], 96
        $region60: #{tpu_custom_call.1} parent=39 // pred_fallthru
          _
        %s284 = sand.u32 %s32, 1
        %s285 = scalar_lea.sflag [#allocation3], %s284
        %s286 = sand.u32 %s32, 1
        %s287 = smul.addr %s286, 128
        %s288 = scalar_lea.vmem [#allocation2], %s287
        %p289 = pneg %p45
        %p290 = pneg %p42
        %p291 = pneg %p66
        %p292 = pneg %p63
        %p293 = pneg %p87
        %p294 = pneg %p84
        %p295 = pneg %p108
        %p296 = pneg %p105
        %p297 = pneg %p129
        %p298 = pneg %p126
        %p299 = pneg %p155
        %p300 = pneg %p152
        %s301 = sand.u32 %s142, 1
        %s302 = scalar_lea.sflag [#allocation4], %s301
        %s303 = sand.u32 %s142, 1
        %s304 = smul.addr %s303, 192
        %s305 = scalar_lea.vmem [#allocation11], %s304
        %s306 = smul.u32 8, %s24
        %s307 = smul.u32 8, %s24
        %v308 = vld [vmem:[%s258] sm:$0xff]
        %v309 = vld [vmem:[%s258 + $0x8] sm:$0xff]
        %v310 = vld [vmem:[%s258 + $0x10] sm:$0xff]
        %v311 = vld [vmem:[%s258 + $0x18] sm:$0xff]
        %v312 = vld [vmem:[%s258 + $0x20] sm:$0xff]
        %v313 = vld [vmem:[%s258 + $0x28] sm:$0xff]
        %v314 = vld [vmem:[%s258 + $0x30] sm:$0xff]
        %v315 = vld [vmem:[%s258 + $0x38] sm:$0xff]
        %v316 = vld [vmem:[%s258 + $0x40] sm:$0xff]
        %v317 = vld [vmem:[%s258 + $0x48] sm:$0xff]
        %v318 = vld [vmem:[%s258 + $0x50] sm:$0xff]
        %v319 = vld [vmem:[%s258 + $0x58] sm:$0xff]
        %v320 = vld [vmem:[%s258 + $0x60] sm:$0xff]
        %v321 = vld [vmem:[%s258 + $0x68] sm:$0xff]
        %v322 = vld [vmem:[%s258 + $0x70] sm:$0xff]
        %v323 = vld [vmem:[%s258 + $0x78] sm:$0xff]
        %v324 = vadd.f32 %v308, %v309
        %325 = vadd.xlane.f32.xlu0 %v324
        %v326 = vpop.xlane.xlu0 %325
        %v327 = vadd.f32 %v310, %v311
        %328 = vadd.xlane.f32.xlu0 %v327
        %v329 = vpop.xlane.xlu0 %328
        %v330 = vadd.f32 %v312, %v313
        %331 = vadd.xlane.f32.xlu0 %v330
        %v332 = vpop.xlane.xlu0 %331
        %v333 = vadd.f32 %v314, %v315
        %334 = vadd.xlane.f32.xlu0 %v333
        %v335 = vpop.xlane.xlu0 %334
        %v336 = vadd.f32 %v316, %v317
        %337 = vadd.xlane.f32.xlu0 %v336
        %v338 = vpop.xlane.xlu0 %337
        %v339 = vadd.f32 %v318, %v319
        %340 = vadd.xlane.f32.xlu0 %v339
        %v341 = vpop.xlane.xlu0 %340
        %v342 = vadd.f32 %v320, %v321
        %343 = vadd.xlane.f32.xlu0 %v342
        %v344 = vpop.xlane.xlu0 %343
        %v345 = vadd.f32 %v322, %v323
        %346 = vadd.xlane.f32.xlu0 %v345
        %v347 = vpop.xlane.xlu0 %346
        %v348 = vrcp.pop 256.0
        %v349 = vmul.f32 256.0, %v348
        %v350 = vsub.f32 1.0, %v349
        %v351 = vmul.f32 %v348, %v350
        %v352 = vadd.f32 %v348, %v351
        %vm353 = vweird.f32 %v348
        %v354 = vsel %vm353, %v348, %v352
        %v355 = vmul.f32 %v326, %v354
        %v356 = vmul.f32 %v329, %v354
        %v357 = vmul.f32 %v332, %v354
        %v358 = vmul.f32 %v335, %v354
        %v359 = vmul.f32 %v338, %v354
        %v360 = vmul.f32 %v341, %v354
        %v361 = vmul.f32 %v344, %v354
        %v362 = vmul.f32 %v347, %v354
        %v363 = vsub.f32 %v308, %v355
        %v364 = vsub.f32 %v309, %v355
        %v365 = vsub.f32 %v310, %v356
        %v366 = vsub.f32 %v311, %v356
        %v367 = vsub.f32 %v312, %v357
        %v368 = vsub.f32 %v313, %v357
        %v369 = vsub.f32 %v314, %v358
        %v370 = vsub.f32 %v315, %v358
        %v371 = vsub.f32 %v316, %v359
        %v372 = vsub.f32 %v317, %v359
        %v373 = vsub.f32 %v318, %v360
        %v374 = vsub.f32 %v319, %v360
        %v375 = vsub.f32 %v320, %v361
        %v376 = vsub.f32 %v321, %v361
        %v377 = vsub.f32 %v322, %v362
        %v378 = vsub.f32 %v323, %v362
        %v379 = vmul.f32 %v363, %v363
        %v380 = vmul.f32 %v364, %v364
        %v381 = vmul.f32 %v365, %v365
        %v382 = vmul.f32 %v366, %v366
        %v383 = vmul.f32 %v367, %v367
        %v384 = vmul.f32 %v368, %v368
        %v385 = vmul.f32 %v369, %v369
        %v386 = vmul.f32 %v370, %v370
        %v387 = vmul.f32 %v371, %v371
        %v388 = vmul.f32 %v372, %v372
        %v389 = vmul.f32 %v373, %v373
        %v390 = vmul.f32 %v374, %v374
        %v391 = vmul.f32 %v375, %v375
        %v392 = vmul.f32 %v376, %v376
        %v393 = vmul.f32 %v377, %v377
        %v394 = vmul.f32 %v378, %v378
        %v395 = vadd.f32 %v379, %v380
        %396 = vadd.xlane.f32.xlu0 %v395
        %v397 = vpop.xlane.xlu0 %396
        %v398 = vadd.f32 %v381, %v382
        %399 = vadd.xlane.f32.xlu0 %v398
        %v400 = vpop.xlane.xlu0 %399
        %v401 = vadd.f32 %v383, %v384
        %402 = vadd.xlane.f32.xlu0 %v401
        %v403 = vpop.xlane.xlu0 %402
        %v404 = vadd.f32 %v385, %v386
        %405 = vadd.xlane.f32.xlu0 %v404
        %v406 = vpop.xlane.xlu0 %405
        %v407 = vadd.f32 %v387, %v388
        %408 = vadd.xlane.f32.xlu0 %v407
        %v409 = vpop.xlane.xlu0 %408
        %v410 = vadd.f32 %v389, %v390
        %411 = vadd.xlane.f32.xlu0 %v410
        %v412 = vpop.xlane.xlu0 %411
        %v413 = vadd.f32 %v391, %v392
        %414 = vadd.xlane.f32.xlu0 %v413
        %v415 = vpop.xlane.xlu0 %414
        %v416 = vadd.f32 %v393, %v394
        %417 = vadd.xlane.f32.xlu0 %v416
        %v418 = vpop.xlane.xlu0 %417
        %v419 = vmul.f32 %v397, %v354
        %v420 = vmul.f32 %v400, %v354
        %v421 = vmul.f32 %v403, %v354
        %v422 = vmul.f32 %v406, %v354
        %v423 = vmul.f32 %v409, %v354
        %v424 = vmul.f32 %v412, %v354
        %v425 = vmul.f32 %v415, %v354
        %v426 = vmul.f32 %v418, %v354
        %v427 = vadd.f32 %v419, 1e-05
        %v428 = vadd.f32 %v420, 1e-05
        %v429 = vadd.f32 %v421, 1e-05
        %v430 = vadd.f32 %v422, 1e-05
        %v431 = vadd.f32 %v423, 1e-05
        %v432 = vadd.f32 %v424, 1e-05
        %v433 = vadd.f32 %v425, 1e-05
        %v434 = vadd.f32 %v426, 1e-05
        %v435 = vrsqrt.pop %v427
        %v436 = vmul.f32 %v435, %v427
        %v437 = vmul.f32 %v436, %v435
        %v438 = vmul.f32 0.5, %v437
        %v439 = vsub.f32 1.5, %v438
        %v440 = vmul.f32 %v435, %v439
        %vm441 = vweird.f32 %v427
        %vm442 = vweird.f32 %v435
        %vm443 = vmor %vm441, %vm442
        %v444 = vsel %vm443, %v435, %v440
        %v445 = vrsqrt.pop %v428
        %v446 = vmul.f32 %v445, %v428
        %v447 = vmul.f32 %v446, %v445
        %v448 = vmul.f32 0.5, %v447
        %v449 = vsub.f32 1.5, %v448
        %v450 = vmul.f32 %v445, %v449
        %vm451 = vweird.f32 %v428
        %vm452 = vweird.f32 %v445
        %vm453 = vmor %vm451, %vm452
        %v454 = vsel %vm453, %v445, %v450
        %v455 = vrsqrt.pop %v429
        %v456 = vmul.f32 %v455, %v429
        %v457 = vmul.f32 %v456, %v455
        %v458 = vmul.f32 0.5, %v457
        %v459 = vsub.f32 1.5, %v458
        %v460 = vmul.f32 %v455, %v459
        %vm461 = vweird.f32 %v429
        %vm462 = vweird.f32 %v455
        %vm463 = vmor %vm461, %vm462
        %v464 = vsel %vm463, %v455, %v460
        %v465 = vrsqrt.pop %v430
        %v466 = vmul.f32 %v465, %v430
        %v467 = vmul.f32 %v466, %v465
        %v468 = vmul.f32 0.5, %v467
        %v469 = vsub.f32 1.5, %v468
        %v470 = vmul.f32 %v465, %v469
        %vm471 = vweird.f32 %v430
        %vm472 = vweird.f32 %v465
        %vm473 = vmor %vm471, %vm472
        %v474 = vsel %vm473, %v465, %v470
        %v475 = vrsqrt.pop %v431
        %v476 = vmul.f32 %v475, %v431
        %v477 = vmul.f32 %v476, %v475
        %v478 = vmul.f32 0.5, %v477
        %v479 = vsub.f32 1.5, %v478
        %v480 = vmul.f32 %v475, %v479
        %vm481 = vweird.f32 %v431
        %vm482 = vweird.f32 %v475
        %vm483 = vmor %vm481, %vm482
        %v484 = vsel %vm483, %v475, %v480
        %v485 = vrsqrt.pop %v432
        %v486 = vmul.f32 %v485, %v432
        %v487 = vmul.f32 %v486, %v485
        %v488 = vmul.f32 0.5, %v487
        %v489 = vsub.f32 1.5, %v488
        %v490 = vmul.f32 %v485, %v489
        %vm491 = vweird.f32 %v432
        %vm492 = vweird.f32 %v485
        %vm493 = vmor %vm491, %vm492
        %v494 = vsel %vm493, %v485, %v490
        %v495 = vrsqrt.pop %v433
        %v496 = vmul.f32 %v495, %v433
        %v497 = vmul.f32 %v496, %v495
        %v498 = vmul.f32 0.5, %v497
        %v499 = vsub.f32 1.5, %v498
        %v500 = vmul.f32 %v495, %v499
        %vm501 = vweird.f32 %v433
        %vm502 = vweird.f32 %v495
        %vm503 = vmor %vm501, %vm502
        %v504 = vsel %vm503, %v495, %v500
        %v505 = vrsqrt.pop %v434
        %v506 = vmul.f32 %v505, %v434
        %v507 = vmul.f32 %v506, %v505
        %v508 = vmul.f32 0.5, %v507
        %v509 = vsub.f32 1.5, %v508
        %v510 = vmul.f32 %v505, %v509
        %vm511 = vweird.f32 %v434
        %vm512 = vweird.f32 %v505
        %vm513 = vmor %vm511, %vm512
        %v514 = vsel %vm513, %v505, %v510
        %v515 = vmul.f32 %v363, %v444
        %v516 = vmul.f32 %v364, %v444
        %v517 = vmul.f32 %v365, %v454
        %v518 = vmul.f32 %v366, %v454
        %v519 = vmul.f32 %v367, %v464
        %v520 = vmul.f32 %v368, %v464
        %v521 = vmul.f32 %v369, %v474
        %v522 = vmul.f32 %v370, %v474
        %v523 = vmul.f32 %v371, %v484
        %v524 = vmul.f32 %v372, %v484
        %v525 = vmul.f32 %v373, %v494
        %v526 = vmul.f32 %v374, %v494
        %v527 = vmul.f32 %v375, %v504
        %v528 = vmul.f32 %v376, %v504
        %v529 = vmul.f32 %v377, %v514
        %v530 = vmul.f32 %v378, %v514
        %v531 = vld [vmem:[#allocation5] sm:$0x3]
        %v533 = vperm.slane %v531, 0
        %v534 = vperm.slane %v531, 1
        %v537 = vmul.f32 %v515, %v533
        %v538 = vmul.f32 %v516, %v534
        %v539 = vmul.f32 %v517, %v533
        %v540 = vmul.f32 %v518, %v534
        %v541 = vmul.f32 %v519, %v533
        %v542 = vmul.f32 %v520, %v534
        %v543 = vmul.f32 %v521, %v533
        %v544 = vmul.f32 %v522, %v534
        %v545 = vmul.f32 %v523, %v533
        %v546 = vmul.f32 %v524, %v534
        %v547 = vmul.f32 %v525, %v533
        %v548 = vmul.f32 %v526, %v534
        %v549 = vmul.f32 %v527, %v533
        %v550 = vmul.f32 %v528, %v534
        %v551 = vmul.f32 %v529, %v533
        %v552 = vmul.f32 %v530, %v534
        %v553 = vld [vmem:[#allocation7] sm:$0x3]
        %v555 = vperm.slane %v553, 0
        %v556 = vperm.slane %v553, 1
        %v559 = vadd.f32 %v537, %v555
        %v560 = vadd.f32 %v538, %v556
        %v561 = vadd.f32 %v539, %v555
        %v562 = vadd.f32 %v540, %v556
        %v563 = vadd.f32 %v541, %v555
        %v564 = vadd.f32 %v542, %v556
        %v565 = vadd.f32 %v543, %v555
        %v566 = vadd.f32 %v544, %v556
        %v567 = vadd.f32 %v545, %v555
        %v568 = vadd.f32 %v546, %v556
        %v569 = vadd.f32 %v547, %v555
        %v570 = vadd.f32 %v548, %v556
        %v571 = vadd.f32 %v549, %v555
        %v572 = vadd.f32 %v550, %v556
        %v573 = vadd.f32 %v551, %v555
        %v574 = vadd.f32 %v552, %v556
        %v575 = vpack.c.bf16 %v561, %v559
        %v576 = vpack.c.bf16 %v562, %v560
        %v577 = vpack.c.bf16 %v565, %v563
        %v578 = vpack.c.bf16 %v566, %v564
        %v579 = vpack.c.bf16 %v569, %v567
        %v580 = vpack.c.bf16 %v570, %v568
        %v581 = vpack.c.bf16 %v573, %v571
        %v582 = vpack.c.bf16 %v574, %v572
        %v583 = vld [vmem:[#allocation8] sm:$0xff]
        %v584 = vld [vmem:[#allocation8 + $0x8] sm:$0xff]
        %v585 = vld [vmem:[#allocation8 + $0x10] sm:$0xff]
        %v586 = vld [vmem:[#allocation8 + $0x18] sm:$0xff]
        %v587 = vld [vmem:[#allocation8 + $0x20] sm:$0xff]
        %v588 = vld [vmem:[#allocation8 + $0x28] sm:$0xff]
        %v589 = vld [vmem:[#allocation8 + $0x30] sm:$0xff]
        %v590 = vld [vmem:[#allocation8 + $0x38] sm:$0xff]
        %v591 = vld [vmem:[#allocation8 + $0x40] sm:$0xff]
        %v592 = vld [vmem:[#allocation8 + $0x48] sm:$0xff]
        %v593 = vld [vmem:[#allocation8 + $0x50] sm:$0xff]
        %v594 = vld [vmem:[#allocation8 + $0x58] sm:$0xff]
        %v595 = vld [vmem:[#allocation8 + $0x60] sm:$0xff]
        %v596 = vld [vmem:[#allocation8 + $0x68] sm:$0xff]
        %v597 = vld [vmem:[#allocation8 + $0x70] sm:$0xff]
        %v598 = vld [vmem:[#allocation8 + $0x78] sm:$0xff]
        %v599 = vld [vmem:[#allocation8 + $0x80] sm:$0xff]
        %v600 = vld [vmem:[#allocation8 + $0x88] sm:$0xff]
        %v601 = vld [vmem:[#allocation8 + $0x90] sm:$0xff]
        %v602 = vld [vmem:[#allocation8 + $0x98] sm:$0xff]
        %v603 = vld [vmem:[#allocation8 + $0xa0] sm:$0xff]
        %v604 = vld [vmem:[#allocation8 + $0xa8] sm:$0xff]
        %v605 = vld [vmem:[#allocation8 + $0xb0] sm:$0xff]
        %v606 = vld [vmem:[#allocation8 + $0xb8] sm:$0xff]
        %v607 = vld [vmem:[#allocation8 + $0xc0] sm:$0xff]
        %v608 = vld [vmem:[#allocation8 + $0xc8] sm:$0xff]
        %v609 = vld [vmem:[#allocation8 + $0xd0] sm:$0xff]
        %v610 = vld [vmem:[#allocation8 + $0xd8] sm:$0xff]
        %v611 = vld [vmem:[#allocation8 + $0xe0] sm:$0xff]
        %v612 = vld [vmem:[#allocation8 + $0xe8] sm:$0xff]
        %v613 = vld [vmem:[#allocation8 + $0xf0] sm:$0xff]
        %v614 = vld [vmem:[#allocation8 + $0xf8] sm:$0xff]
        %v615 = vld [vmem:[#allocation8 + $0x100] sm:$0xff]
        %v616 = vld [vmem:[#allocation8 + $0x108] sm:$0xff]
        %v617 = vld [vmem:[#allocation8 + $0x110] sm:$0xff]
        %v618 = vld [vmem:[#allocation8 + $0x118] sm:$0xff]
        %v619 = vld [vmem:[#allocation8 + $0x120] sm:$0xff]
        %v620 = vld [vmem:[#allocation8 + $0x128] sm:$0xff]
        %v621 = vld [vmem:[#allocation8 + $0x130] sm:$0xff]
        %v622 = vld [vmem:[#allocation8 + $0x138] sm:$0xff]
        %v623 = vld [vmem:[#allocation8 + $0x140] sm:$0xff]
        %v624 = vld [vmem:[#allocation8 + $0x148] sm:$0xff]
        %v625 = vld [vmem:[#allocation8 + $0x150] sm:$0xff]
        %v626 = vld [vmem:[#allocation8 + $0x158] sm:$0xff]
        %v627 = vld [vmem:[#allocation8 + $0x160] sm:$0xff]
        %v628 = vld [vmem:[#allocation8 + $0x168] sm:$0xff]
        %v629 = vld [vmem:[#allocation8 + $0x170] sm:$0xff]
        %v630 = vld [vmem:[#allocation8 + $0x178] sm:$0xff]
        %v631 = vld [vmem:[#allocation8 + $0x180] sm:$0xff]
        %v632 = vld [vmem:[#allocation8 + $0x188] sm:$0xff]
        %v633 = vld [vmem:[#allocation8 + $0x190] sm:$0xff]
        %v634 = vld [vmem:[#allocation8 + $0x198] sm:$0xff]
        %v635 = vld [vmem:[#allocation8 + $0x1a0] sm:$0xff]
        %v636 = vld [vmem:[#allocation8 + $0x1a8] sm:$0xff]
        %v637 = vld [vmem:[#allocation8 + $0x1b0] sm:$0xff]
        %v638 = vld [vmem:[#allocation8 + $0x1b8] sm:$0xff]
        %v639 = vld [vmem:[#allocation8 + $0x1c0] sm:$0xff]
        %v640 = vld [vmem:[#allocation8 + $0x1c8] sm:$0xff]
        %v641 = vld [vmem:[#allocation8 + $0x1d0] sm:$0xff]
        %v642 = vld [vmem:[#allocation8 + $0x1d8] sm:$0xff]
        %v643 = vld [vmem:[#allocation8 + $0x1e0] sm:$0xff]
        %v644 = vld [vmem:[#allocation8 + $0x1e8] sm:$0xff]
        %v645 = vld [vmem:[#allocation8 + $0x1f0] sm:$0xff]
        %v646 = vld [vmem:[#allocation8 + $0x1f8] sm:$0xff]
        %v647 = vld [vmem:[#allocation8 + $0x200] sm:$0xff]
        %v648 = vld [vmem:[#allocation8 + $0x208] sm:$0xff]
        %v649 = vld [vmem:[#allocation8 + $0x210] sm:$0xff]
        %v650 = vld [vmem:[#allocation8 + $0x218] sm:$0xff]
        %v651 = vld [vmem:[#allocation8 + $0x220] sm:$0xff]
        %v652 = vld [vmem:[#allocation8 + $0x228] sm:$0xff]
        %v653 = vld [vmem:[#allocation8 + $0x230] sm:$0xff]
        %v654 = vld [vmem:[#allocation8 + $0x238] sm:$0xff]
        %v655 = vld [vmem:[#allocation8 + $0x240] sm:$0xff]
        %v656 = vld [vmem:[#allocation8 + $0x248] sm:$0xff]
        %v657 = vld [vmem:[#allocation8 + $0x250] sm:$0xff]
        %v658 = vld [vmem:[#allocation8 + $0x258] sm:$0xff]
        %v659 = vld [vmem:[#allocation8 + $0x260] sm:$0xff]
        %v660 = vld [vmem:[#allocation8 + $0x268] sm:$0xff]
        %v661 = vld [vmem:[#allocation8 + $0x270] sm:$0xff]
        %v662 = vld [vmem:[#allocation8 + $0x278] sm:$0xff]
        %v663 = vld [vmem:[#allocation8 + $0x280] sm:$0xff]
        %v664 = vld [vmem:[#allocation8 + $0x288] sm:$0xff]
        %v665 = vld [vmem:[#allocation8 + $0x290] sm:$0xff]
        %v666 = vld [vmem:[#allocation8 + $0x298] sm:$0xff]
        %v667 = vld [vmem:[#allocation8 + $0x2a0] sm:$0xff]
        %v668 = vld [vmem:[#allocation8 + $0x2a8] sm:$0xff]
        %v669 = vld [vmem:[#allocation8 + $0x2b0] sm:$0xff]
        %v670 = vld [vmem:[#allocation8 + $0x2b8] sm:$0xff]
        %v671 = vld [vmem:[#allocation8 + $0x2c0] sm:$0xff]
        %v672 = vld [vmem:[#allocation8 + $0x2c8] sm:$0xff]
        %v673 = vld [vmem:[#allocation8 + $0x2d0] sm:$0xff]
        %v674 = vld [vmem:[#allocation8 + $0x2d8] sm:$0xff]
        %v675 = vld [vmem:[#allocation8 + $0x2e0] sm:$0xff]
        %v676 = vld [vmem:[#allocation8 + $0x2e8] sm:$0xff]
        %v677 = vld [vmem:[#allocation8 + $0x2f0] sm:$0xff]
        %v678 = vld [vmem:[#allocation8 + $0x2f8] sm:$0xff]
        %v679 = vld [vmem:[#allocation10] sm:$0x3f]
        %v681 = vperm.slane %v679, 0
        %v682 = vperm.slane %v679, 1
        %v683 = vperm.slane %v679, 2
        %v684 = vperm.slane %v679, 3
        %v685 = vperm.slane %v679, 4
        %v686 = vperm.slane %v679, 5
        %v789 = vunpack.c.l.b16 %v583
        %v790 = vunpack.c.h.b16 %v583
        %v791 = vunpack.c.l.b16 %v584
        %v792 = vunpack.c.h.b16 %v584
        %v793 = vunpack.c.l.b16 %v585
        %v794 = vunpack.c.h.b16 %v585
        %v795 = vunpack.c.l.b16 %v586
        %v796 = vunpack.c.h.b16 %v586
        %v797 = vunpack.c.l.b16 %v587
        %v798 = vunpack.c.h.b16 %v587
        %v799 = vunpack.c.l.b16 %v588
        %v800 = vunpack.c.h.b16 %v588
        %v801 = vunpack.c.l.b16 %v589
        %v802 = vunpack.c.h.b16 %v589
        %v803 = vunpack.c.l.b16 %v590
        %v804 = vunpack.c.h.b16 %v590
        %v805 = vunpack.c.l.b16 %v591
        %v806 = vunpack.c.h.b16 %v591
        %v807 = vunpack.c.l.b16 %v592
        %v808 = vunpack.c.h.b16 %v592
        %v809 = vunpack.c.l.b16 %v593
        %v810 = vunpack.c.h.b16 %v593
        %v811 = vunpack.c.l.b16 %v594
        %v812 = vunpack.c.h.b16 %v594
        %v813 = vunpack.c.l.b16 %v595
        %v814 = vunpack.c.h.b16 %v595
        %v815 = vunpack.c.l.b16 %v596
        %v816 = vunpack.c.h.b16 %v596
        %v817 = vunpack.c.l.b16 %v597
        %v818 = vunpack.c.h.b16 %v597
        %v819 = vunpack.c.l.b16 %v598
        %v820 = vunpack.c.h.b16 %v598
        %v821 = vunpack.c.l.b16 %v599
        %v822 = vunpack.c.h.b16 %v599
        %v823 = vunpack.c.l.b16 %v600
        %v824 = vunpack.c.h.b16 %v600
        %v825 = vunpack.c.l.b16 %v601
        %v826 = vunpack.c.h.b16 %v601
        %v827 = vunpack.c.l.b16 %v602
        %v828 = vunpack.c.h.b16 %v602
        %v829 = vunpack.c.l.b16 %v603
        %v830 = vunpack.c.h.b16 %v603
        %v831 = vunpack.c.l.b16 %v604
        %v832 = vunpack.c.h.b16 %v604
        %v833 = vunpack.c.l.b16 %v605
        %v834 = vunpack.c.h.b16 %v605
        %v835 = vunpack.c.l.b16 %v606
        %v836 = vunpack.c.h.b16 %v606
        %v837 = vunpack.c.l.b16 %v607
        %v838 = vunpack.c.h.b16 %v607
        %v839 = vunpack.c.l.b16 %v608
        %v840 = vunpack.c.h.b16 %v608
        %v841 = vunpack.c.l.b16 %v609
        %v842 = vunpack.c.h.b16 %v609
        %v843 = vunpack.c.l.b16 %v610
        %v844 = vunpack.c.h.b16 %v610
        %v845 = vunpack.c.l.b16 %v611
        %v846 = vunpack.c.h.b16 %v611
        %v847 = vunpack.c.l.b16 %v612
        %v848 = vunpack.c.h.b16 %v612
        %v849 = vunpack.c.l.b16 %v613
        %v850 = vunpack.c.h.b16 %v613
        %v851 = vunpack.c.l.b16 %v614
        %v852 = vunpack.c.h.b16 %v614
        %v853 = vunpack.c.l.b16 %v615
        %v854 = vunpack.c.h.b16 %v615
        %v855 = vunpack.c.l.b16 %v616
        %v856 = vunpack.c.h.b16 %v616
        %v857 = vunpack.c.l.b16 %v617
        %v858 = vunpack.c.h.b16 %v617
        %v859 = vunpack.c.l.b16 %v618
        %v860 = vunpack.c.h.b16 %v618
        %v861 = vunpack.c.l.b16 %v619
        %v862 = vunpack.c.h.b16 %v619
        %v863 = vunpack.c.l.b16 %v620
        %v864 = vunpack.c.h.b16 %v620
        %v865 = vunpack.c.l.b16 %v621
        %v866 = vunpack.c.h.b16 %v621
        %v867 = vunpack.c.l.b16 %v622
        %v868 = vunpack.c.h.b16 %v622
        %v869 = vunpack.c.l.b16 %v623
        %v870 = vunpack.c.h.b16 %v623
        %v871 = vunpack.c.l.b16 %v624
        %v872 = vunpack.c.h.b16 %v624
        %v873 = vunpack.c.l.b16 %v625
        %v874 = vunpack.c.h.b16 %v625
        %v875 = vunpack.c.l.b16 %v626
        %v876 = vunpack.c.h.b16 %v626
        %v877 = vunpack.c.l.b16 %v627
        %v878 = vunpack.c.h.b16 %v627
        %v879 = vunpack.c.l.b16 %v628
        %v880 = vunpack.c.h.b16 %v628
        %v881 = vunpack.c.l.b16 %v629
        %v882 = vunpack.c.h.b16 %v629
        %v883 = vunpack.c.l.b16 %v630
        %v884 = vunpack.c.h.b16 %v630
        %v885 = vunpack.c.l.b16 %v631
        %v886 = vunpack.c.h.b16 %v631
        %v887 = vunpack.c.l.b16 %v632
        %v888 = vunpack.c.h.b16 %v632
        %v889 = vunpack.c.l.b16 %v633
        %v890 = vunpack.c.h.b16 %v633
        %v891 = vunpack.c.l.b16 %v634
        %v892 = vunpack.c.h.b16 %v634
        %v893 = vunpack.c.l.b16 %v635
        %v894 = vunpack.c.h.b16 %v635
        %v895 = vunpack.c.l.b16 %v636
        %v896 = vunpack.c.h.b16 %v636
        %v897 = vunpack.c.l.b16 %v637
        %v898 = vunpack.c.h.b16 %v637
        %v899 = vunpack.c.l.b16 %v638
        %v900 = vunpack.c.h.b16 %v638
        %v901 = vunpack.c.l.b16 %v639
        %v902 = vunpack.c.h.b16 %v639
        %v903 = vunpack.c.l.b16 %v640
        %v904 = vunpack.c.h.b16 %v640
        %v905 = vunpack.c.l.b16 %v641
        %v906 = vunpack.c.h.b16 %v641
        %v907 = vunpack.c.l.b16 %v642
        %v908 = vunpack.c.h.b16 %v642
        %v909 = vunpack.c.l.b16 %v643
        %v910 = vunpack.c.h.b16 %v643
        %v911 = vunpack.c.l.b16 %v644
        %v912 = vunpack.c.h.b16 %v644
        %v913 = vunpack.c.l.b16 %v645
        %v914 = vunpack.c.h.b16 %v645
        %v915 = vunpack.c.l.b16 %v646
        %v916 = vunpack.c.h.b16 %v646
        %v917 = vunpack.c.l.b16 %v647
        %v918 = vunpack.c.h.b16 %v647
        %v919 = vunpack.c.l.b16 %v648
        %v920 = vunpack.c.h.b16 %v648
        %v921 = vunpack.c.l.b16 %v649
        %v922 = vunpack.c.h.b16 %v649
        %v923 = vunpack.c.l.b16 %v650
        %v924 = vunpack.c.h.b16 %v650
        %v925 = vunpack.c.l.b16 %v651
        %v926 = vunpack.c.h.b16 %v651
        %v927 = vunpack.c.l.b16 %v652
        %v928 = vunpack.c.h.b16 %v652
        %v929 = vunpack.c.l.b16 %v653
        %v930 = vunpack.c.h.b16 %v653
        %v931 = vunpack.c.l.b16 %v654
        %v932 = vunpack.c.h.b16 %v654
        %v933 = vunpack.c.l.b16 %v655
        %v934 = vunpack.c.h.b16 %v655
        %v935 = vunpack.c.l.b16 %v656
        %v936 = vunpack.c.h.b16 %v656
        %v937 = vunpack.c.l.b16 %v657
        %v938 = vunpack.c.h.b16 %v657
        %v939 = vunpack.c.l.b16 %v658
        %v940 = vunpack.c.h.b16 %v658
        %v941 = vunpack.c.l.b16 %v659
        %v942 = vunpack.c.h.b16 %v659
        %v943 = vunpack.c.l.b16 %v660
        %v944 = vunpack.c.h.b16 %v660
        %v945 = vunpack.c.l.b16 %v661
        %v946 = vunpack.c.h.b16 %v661
        %v947 = vunpack.c.l.b16 %v662
        %v948 = vunpack.c.h.b16 %v662
        %v949 = vunpack.c.l.b16 %v663
        %v950 = vunpack.c.h.b16 %v663
        %v951 = vunpack.c.l.b16 %v664
        %v952 = vunpack.c.h.b16 %v664
        %v953 = vunpack.c.l.b16 %v665
        %v954 = vunpack.c.h.b16 %v665
        %v955 = vunpack.c.l.b16 %v666
        %v956 = vunpack.c.h.b16 %v666
        %v957 = vunpack.c.l.b16 %v667
        %v958 = vunpack.c.h.b16 %v667
        %v959 = vunpack.c.l.b16 %v668
        %v960 = vunpack.c.h.b16 %v668
        %v961 = vunpack.c.l.b16 %v669
        %v962 = vunpack.c.h.b16 %v669
        %v963 = vunpack.c.l.b16 %v670
        %v964 = vunpack.c.h.b16 %v670
        %v965 = vunpack.c.l.b16 %v671
        %v966 = vunpack.c.h.b16 %v671
        %v967 = vunpack.c.l.b16 %v672
        %v968 = vunpack.c.h.b16 %v672
        %v969 = vunpack.c.l.b16 %v673
        %v970 = vunpack.c.h.b16 %v673
        %v971 = vunpack.c.l.b16 %v674
        %v972 = vunpack.c.h.b16 %v674
        %v973 = vunpack.c.l.b16 %v675
        %v974 = vunpack.c.h.b16 %v675
        %v975 = vunpack.c.l.b16 %v676
        %v976 = vunpack.c.h.b16 %v676
        %v977 = vunpack.c.l.b16 %v677
        %v978 = vunpack.c.h.b16 %v677
        %v979 = vunpack.c.l.b16 %v678
        %v980 = vunpack.c.h.b16 %v678
        %v981 = vpack.c.b16 %v795, %v789
        %v982 = vpack.c.b16 %v796, %v790
        %v983 = vpack.c.b16 %v797, %v791
        %v984 = vpack.c.b16 %v798, %v792
        %v985 = vpack.c.b16 %v799, %v793
        %v986 = vpack.c.b16 %v800, %v794
        %v987 = vpack.c.b16 %v807, %v801
        %v988 = vpack.c.b16 %v808, %v802
        %v989 = vpack.c.b16 %v809, %v803
        %v990 = vpack.c.b16 %v810, %v804
        %v991 = vpack.c.b16 %v811, %v805
        %v992 = vpack.c.b16 %v812, %v806
        %v993 = vpack.c.b16 %v819, %v813
        %v994 = vpack.c.b16 %v820, %v814
        %v995 = vpack.c.b16 %v821, %v815
        %v996 = vpack.c.b16 %v822, %v816
        %v997 = vpack.c.b16 %v823, %v817
        %v998 = vpack.c.b16 %v824, %v818
        %v999 = vpack.c.b16 %v831, %v825
        %v1000 = vpack.c.b16 %v832, %v826
        %v1001 = vpack.c.b16 %v833, %v827
        %v1002 = vpack.c.b16 %v834, %v828
        %v1003 = vpack.c.b16 %v835, %v829
        %v1004 = vpack.c.b16 %v836, %v830
        %v1005 = vpack.c.b16 %v843, %v837
        %v1006 = vpack.c.b16 %v844, %v838
        %v1007 = vpack.c.b16 %v845, %v839
        %v1008 = vpack.c.b16 %v846, %v840
        %v1009 = vpack.c.b16 %v847, %v841
        %v1010 = vpack.c.b16 %v848, %v842
        %v1011 = vpack.c.b16 %v855, %v849
        %v1012 = vpack.c.b16 %v856, %v850
        %v1013 = vpack.c.b16 %v857, %v851
        %v1014 = vpack.c.b16 %v858, %v852
        %v1015 = vpack.c.b16 %v859, %v853
        %v1016 = vpack.c.b16 %v860, %v854
        %v1017 = vpack.c.b16 %v867, %v861
        %v1018 = vpack.c.b16 %v868, %v862
        %v1019 = vpack.c.b16 %v869, %v863
        %v1020 = vpack.c.b16 %v870, %v864
        %v1021 = vpack.c.b16 %v871, %v865
        %v1022 = vpack.c.b16 %v872, %v866
        %v1023 = vpack.c.b16 %v879, %v873
        %v1024 = vpack.c.b16 %v880, %v874
        %v1025 = vpack.c.b16 %v881, %v875
        %v1026 = vpack.c.b16 %v882, %v876
        %v1027 = vpack.c.b16 %v883, %v877
        %v1028 = vpack.c.b16 %v884, %v878
        %v1029 = vpack.c.b16 %v891, %v885
        %v1030 = vpack.c.b16 %v892, %v886
        %v1031 = vpack.c.b16 %v893, %v887
        %v1032 = vpack.c.b16 %v894, %v888
        %v1033 = vpack.c.b16 %v895, %v889
        %v1034 = vpack.c.b16 %v896, %v890
        %v1035 = vpack.c.b16 %v903, %v897
        %v1036 = vpack.c.b16 %v904, %v898
        %v1037 = vpack.c.b16 %v905, %v899
        %v1038 = vpack.c.b16 %v906, %v900
        %v1039 = vpack.c.b16 %v907, %v901
        %v1040 = vpack.c.b16 %v908, %v902
        %v1041 = vpack.c.b16 %v915, %v909
        %v1042 = vpack.c.b16 %v916, %v910
        %v1043 = vpack.c.b16 %v917, %v911
        %v1044 = vpack.c.b16 %v918, %v912
        %v1045 = vpack.c.b16 %v919, %v913
        %v1046 = vpack.c.b16 %v920, %v914
        %v1047 = vpack.c.b16 %v927, %v921
        %v1048 = vpack.c.b16 %v928, %v922
        %v1049 = vpack.c.b16 %v929, %v923
        %v1050 = vpack.c.b16 %v930, %v924
        %v1051 = vpack.c.b16 %v931, %v925
        %v1052 = vpack.c.b16 %v932, %v926
        %v1053 = vpack.c.b16 %v939, %v933
        %v1054 = vpack.c.b16 %v940, %v934
        %v1055 = vpack.c.b16 %v941, %v935
        %v1056 = vpack.c.b16 %v942, %v936
        %v1057 = vpack.c.b16 %v943, %v937
        %v1058 = vpack.c.b16 %v944, %v938
        %v1059 = vpack.c.b16 %v951, %v945
        %v1060 = vpack.c.b16 %v952, %v946
        %v1061 = vpack.c.b16 %v953, %v947
        %v1062 = vpack.c.b16 %v954, %v948
        %v1063 = vpack.c.b16 %v955, %v949
        %v1064 = vpack.c.b16 %v956, %v950
        %v1065 = vpack.c.b16 %v963, %v957
        %v1066 = vpack.c.b16 %v964, %v958
        %v1067 = vpack.c.b16 %v965, %v959
        %v1068 = vpack.c.b16 %v966, %v960
        %v1069 = vpack.c.b16 %v967, %v961
        %v1070 = vpack.c.b16 %v968, %v962
        %v1071 = vpack.c.b16 %v975, %v969
        %v1072 = vpack.c.b16 %v976, %v970
        %v1073 = vpack.c.b16 %v977, %v971
        %v1074 = vpack.c.b16 %v978, %v972
        %v1075 = vpack.c.b16 %v979, %v973
        %v1076 = vpack.c.b16 %v980, %v974
        %1173 = vmatpush.bf16.msra.mxu0 %v1023
        %1174 = vmatpush.bf16.msra.mxu0 %v1017
        %1175 = vmatpush.bf16.msra.mxu0 %v1011
        %1176 = vmatpush.bf16.msra.mxu0 %v1005
        %1177 = vmatpush.bf16.msra.mxu0 %v999
        %1178 = vmatpush.bf16.msra.mxu0 %v993
        %1179 = vmatpush.bf16.msra.mxu0 %v987
        %1180 = vmatpush.bf16.msra.mxu0 %v981
        %1181 = vmatmul.bf16.gmra.mxu0 %v575
        %v1182 = vpop.f32.mrf.mxu0
        %v1183 = vadd.f32 %v681, %v1182
        %v1184 = vpop.f32.mrf.mxu0
        %v1185 = vadd.f32 %v681, %v1184
        %1186 = vmatmul.bf16.gmra.mxu0 %v577
        %v1187 = vpop.f32.mrf.mxu0
        %v1188 = vadd.f32 %v681, %v1187
        %v1189 = vpop.f32.mrf.mxu0
        %v1190 = vadd.f32 %v681, %v1189
        %1191 = vmatmul.bf16.gmra.mxu0 %v579
        %v1192 = vpop.f32.mrf.mxu0
        %v1193 = vadd.f32 %v681, %v1192
        %v1194 = vpop.f32.mrf.mxu0
        %v1195 = vadd.f32 %v681, %v1194
        %1196 = vmatmul.bf16.gmra.mxu0 %v581
        %v1197 = vpop.f32.mrf.mxu0
        %v1198 = vadd.f32 %v681, %v1197
        %v1199 = vpop.f32.mrf.mxu0
        %v1200 = vadd.f32 %v681, %v1199
        %1201 = vdwg.mxu0
        %1202 = vmatpush.bf16.msra.mxu0 %v1071
        %1203 = vmatpush.bf16.msra.mxu0 %v1065
        %1204 = vmatpush.bf16.msra.mxu0 %v1059
        %1205 = vmatpush.bf16.msra.mxu0 %v1053
        %1206 = vmatpush.bf16.msra.mxu0 %v1047
        %1207 = vmatpush.bf16.msra.mxu0 %v1041
        %1208 = vmatpush.bf16.msra.mxu0 %v1035
        %1209 = vmatpush.bf16.msra.mxu0 %v1029
        %1210 = vmatmul.bf16.gmra.mxu0 %v576
        %v1211 = vpop.f32.mrf.mxu0
        %v1212 = vadd.f32 %v1183, %v1211
        %v1213 = vpop.f32.mrf.mxu0
        %v1214 = vadd.f32 %v1185, %v1213
        %1215 = vmatmul.bf16.gmra.mxu0 %v578
        %v1216 = vpop.f32.mrf.mxu0
        %v1217 = vadd.f32 %v1188, %v1216
        %v1218 = vpop.f32.mrf.mxu0
        %v1219 = vadd.f32 %v1190, %v1218
        %1220 = vmatmul.bf16.gmra.mxu0 %v580
        %v1221 = vpop.f32.mrf.mxu0
        %v1222 = vadd.f32 %v1193, %v1221
        %v1223 = vpop.f32.mrf.mxu0
        %v1224 = vadd.f32 %v1195, %v1223
        %1225 = vmatmul.bf16.gmra.mxu0 %v582
        %v1226 = vpop.f32.mrf.mxu0
        %v1227 = vadd.f32 %v1198, %v1226
        %v1228 = vpop.f32.mrf.mxu0
        %v1229 = vadd.f32 %v1200, %v1228
        %1230 = vdwg.mxu0
        %1231 = vmatpush.bf16.msra.mxu0 %v1024
        %1232 = vmatpush.bf16.msra.mxu0 %v1018
        %1233 = vmatpush.bf16.msra.mxu0 %v1012
        %1234 = vmatpush.bf16.msra.mxu0 %v1006
        %1235 = vmatpush.bf16.msra.mxu0 %v1000
        %1236 = vmatpush.bf16.msra.mxu0 %v994
        %1237 = vmatpush.bf16.msra.mxu0 %v988
        %1238 = vmatpush.bf16.msra.mxu0 %v982
        %1239 = vmatmul.bf16.gmra.mxu0 %v575
        %v1240 = vpop.f32.mrf.mxu0
        %v1241 = vadd.f32 %v682, %v1240
        %v1242 = vpop.f32.mrf.mxu0
        %v1243 = vadd.f32 %v682, %v1242
        %1244 = vmatmul.bf16.gmra.mxu0 %v577
        %v1245 = vpop.f32.mrf.mxu0
        %v1246 = vadd.f32 %v682, %v1245
        %v1247 = vpop.f32.mrf.mxu0
        %v1248 = vadd.f32 %v682, %v1247
        %1249 = vmatmul.bf16.gmra.mxu0 %v579
        %v1250 = vpop.f32.mrf.mxu0
        %v1251 = vadd.f32 %v682, %v1250
        %v1252 = vpop.f32.mrf.mxu0
        %v1253 = vadd.f32 %v682, %v1252
        %1254 = vmatmul.bf16.gmra.mxu0 %v581
        %v1255 = vpop.f32.mrf.mxu0
        %v1256 = vadd.f32 %v682, %v1255
        %v1257 = vpop.f32.mrf.mxu0
        %v1258 = vadd.f32 %v682, %v1257
        %1259 = vdwg.mxu0
        %1260 = vmatpush.bf16.msra.mxu0 %v1072
        %1261 = vmatpush.bf16.msra.mxu0 %v1066
        %1262 = vmatpush.bf16.msra.mxu0 %v1060
        %1263 = vmatpush.bf16.msra.mxu0 %v1054
        %1264 = vmatpush.bf16.msra.mxu0 %v1048
        %1265 = vmatpush.bf16.msra.mxu0 %v1042
        %1266 = vmatpush.bf16.msra.mxu0 %v1036
        %1267 = vmatpush.bf16.msra.mxu0 %v1030
        %1268 = vmatmul.bf16.gmra.mxu0 %v576
        %v1269 = vpop.f32.mrf.mxu0
        %v1270 = vadd.f32 %v1241, %v1269
        %v1271 = vpop.f32.mrf.mxu0
        %v1272 = vadd.f32 %v1243, %v1271
        %1273 = vmatmul.bf16.gmra.mxu0 %v578
        %v1274 = vpop.f32.mrf.mxu0
        %v1275 = vadd.f32 %v1246, %v1274
        %v1276 = vpop.f32.mrf.mxu0
        %v1277 = vadd.f32 %v1248, %v1276
        %1278 = vmatmul.bf16.gmra.mxu0 %v580
        %v1279 = vpop.f32.mrf.mxu0
        %v1280 = vadd.f32 %v1251, %v1279
        %v1281 = vpop.f32.mrf.mxu0
        %v1282 = vadd.f32 %v1253, %v1281
        %1283 = vmatmul.bf16.gmra.mxu0 %v582
        %v1284 = vpop.f32.mrf.mxu0
        %v1285 = vadd.f32 %v1256, %v1284
        %v1286 = vpop.f32.mrf.mxu0
        %v1287 = vadd.f32 %v1258, %v1286
        %1288 = vdwg.mxu0
        %1289 = vmatpush.bf16.msra.mxu0 %v1025
        %1290 = vmatpush.bf16.msra.mxu0 %v1019
        %1291 = vmatpush.bf16.msra.mxu0 %v1013
        %1292 = vmatpush.bf16.msra.mxu0 %v1007
        %1293 = vmatpush.bf16.msra.mxu0 %v1001
        %1294 = vmatpush.bf16.msra.mxu0 %v995
        %1295 = vmatpush.bf16.msra.mxu0 %v989
        %1296 = vmatpush.bf16.msra.mxu0 %v983
        %1297 = vmatmul.bf16.gmra.mxu0 %v575
        %v1298 = vpop.f32.mrf.mxu0
        %v1299 = vadd.f32 %v683, %v1298
        %v1300 = vpop.f32.mrf.mxu0
        %v1301 = vadd.f32 %v683, %v1300
        %1302 = vmatmul.bf16.gmra.mxu0 %v577
        %v1303 = vpop.f32.mrf.mxu0
        %v1304 = vadd.f32 %v683, %v1303
        %v1305 = vpop.f32.mrf.mxu0
        %v1306 = vadd.f32 %v683, %v1305
        %1307 = vmatmul.bf16.gmra.mxu0 %v579
        %v1308 = vpop.f32.mrf.mxu0
        %v1309 = vadd.f32 %v683, %v1308
        %v1310 = vpop.f32.mrf.mxu0
        %v1311 = vadd.f32 %v683, %v1310
        %1312 = vmatmul.bf16.gmra.mxu0 %v581
        %v1313 = vpop.f32.mrf.mxu0
        %v1314 = vadd.f32 %v683, %v1313
        %v1315 = vpop.f32.mrf.mxu0
        %v1316 = vadd.f32 %v683, %v1315
        %1317 = vdwg.mxu0
        %1318 = vmatpush.bf16.msra.mxu0 %v1073
        %1319 = vmatpush.bf16.msra.mxu0 %v1067
        %1320 = vmatpush.bf16.msra.mxu0 %v1061
        %1321 = vmatpush.bf16.msra.mxu0 %v1055
        %1322 = vmatpush.bf16.msra.mxu0 %v1049
        %1323 = vmatpush.bf16.msra.mxu0 %v1043
        %1324 = vmatpush.bf16.msra.mxu0 %v1037
        %1325 = vmatpush.bf16.msra.mxu0 %v1031
        %1326 = vmatmul.bf16.gmra.mxu0 %v576
        %v1327 = vpop.f32.mrf.mxu0
        %v1328 = vadd.f32 %v1299, %v1327
        %v1329 = vpop.f32.mrf.mxu0
        %v1330 = vadd.f32 %v1301, %v1329
        %1331 = vmatmul.bf16.gmra.mxu0 %v578
        %v1332 = vpop.f32.mrf.mxu0
        %v1333 = vadd.f32 %v1304, %v1332
        %v1334 = vpop.f32.mrf.mxu0
        %v1335 = vadd.f32 %v1306, %v1334
        %1336 = vmatmul.bf16.gmra.mxu0 %v580
        %v1337 = vpop.f32.mrf.mxu0
        %v1338 = vadd.f32 %v1309, %v1337
        %v1339 = vpop.f32.mrf.mxu0
        %v1340 = vadd.f32 %v1311, %v1339
        %1341 = vmatmul.bf16.gmra.mxu0 %v582
        %v1342 = vpop.f32.mrf.mxu0
        %v1343 = vadd.f32 %v1314, %v1342
        %v1344 = vpop.f32.mrf.mxu0
        %v1345 = vadd.f32 %v1316, %v1344
        %1346 = vdwg.mxu0
        %1347 = vmatpush.bf16.msra.mxu0 %v1026
        %1348 = vmatpush.bf16.msra.mxu0 %v1020
        %1349 = vmatpush.bf16.msra.mxu0 %v1014
        %1350 = vmatpush.bf16.msra.mxu0 %v1008
        %1351 = vmatpush.bf16.msra.mxu0 %v1002
        %1352 = vmatpush.bf16.msra.mxu0 %v996
        %1353 = vmatpush.bf16.msra.mxu0 %v990
        %1354 = vmatpush.bf16.msra.mxu0 %v984
        %1355 = vmatmul.bf16.gmra.mxu0 %v575
        %v1356 = vpop.f32.mrf.mxu0
        %v1357 = vadd.f32 %v684, %v1356
        %v1358 = vpop.f32.mrf.mxu0
        %v1359 = vadd.f32 %v684, %v1358
        %1360 = vmatmul.bf16.gmra.mxu0 %v577
        %v1361 = vpop.f32.mrf.mxu0
        %v1362 = vadd.f32 %v684, %v1361
        %v1363 = vpop.f32.mrf.mxu0
        %v1364 = vadd.f32 %v684, %v1363
        %1365 = vmatmul.bf16.gmra.mxu0 %v579
        %v1366 = vpop.f32.mrf.mxu0
        %v1367 = vadd.f32 %v684, %v1366
        %v1368 = vpop.f32.mrf.mxu0
        %v1369 = vadd.f32 %v684, %v1368
        %1370 = vmatmul.bf16.gmra.mxu0 %v581
        %v1371 = vpop.f32.mrf.mxu0
        %v1372 = vadd.f32 %v684, %v1371
        %v1373 = vpop.f32.mrf.mxu0
        %v1374 = vadd.f32 %v684, %v1373
        %1375 = vdwg.mxu0
        %1376 = vmatpush.bf16.msra.mxu0 %v1074
        %1377 = vmatpush.bf16.msra.mxu0 %v1068
        %1378 = vmatpush.bf16.msra.mxu0 %v1062
        %1379 = vmatpush.bf16.msra.mxu0 %v1056
        %1380 = vmatpush.bf16.msra.mxu0 %v1050
        %1381 = vmatpush.bf16.msra.mxu0 %v1044
        %1382 = vmatpush.bf16.msra.mxu0 %v1038
        %1383 = vmatpush.bf16.msra.mxu0 %v1032
        %1384 = vmatmul.bf16.gmra.mxu0 %v576
        %v1385 = vpop.f32.mrf.mxu0
        %v1386 = vadd.f32 %v1357, %v1385
        %v1387 = vpop.f32.mrf.mxu0
        %v1388 = vadd.f32 %v1359, %v1387
        %1389 = vmatmul.bf16.gmra.mxu0 %v578
        %v1390 = vpop.f32.mrf.mxu0
        %v1391 = vadd.f32 %v1362, %v1390
        %v1392 = vpop.f32.mrf.mxu0
        %v1393 = vadd.f32 %v1364, %v1392
        %1394 = vmatmul.bf16.gmra.mxu0 %v580
        %v1395 = vpop.f32.mrf.mxu0
        %v1396 = vadd.f32 %v1367, %v1395
        %v1397 = vpop.f32.mrf.mxu0
        %v1398 = vadd.f32 %v1369, %v1397
        %1399 = vmatmul.bf16.gmra.mxu0 %v582
        %v1400 = vpop.f32.mrf.mxu0
        %v1401 = vadd.f32 %v1372, %v1400
        %v1402 = vpop.f32.mrf.mxu0
        %v1403 = vadd.f32 %v1374, %v1402
        %1404 = vdwg.mxu0
        %1405 = vmatpush.bf16.msra.mxu0 %v1027
        %1406 = vmatpush.bf16.msra.mxu0 %v1021
        %1407 = vmatpush.bf16.msra.mxu0 %v1015
        %1408 = vmatpush.bf16.msra.mxu0 %v1009
        %1409 = vmatpush.bf16.msra.mxu0 %v1003
        %1410 = vmatpush.bf16.msra.mxu0 %v997
        %1411 = vmatpush.bf16.msra.mxu0 %v991
        %1412 = vmatpush.bf16.msra.mxu0 %v985
        %1413 = vmatmul.bf16.gmra.mxu0 %v575
        %v1414 = vpop.f32.mrf.mxu0
        %v1415 = vadd.f32 %v685, %v1414
        %v1416 = vpop.f32.mrf.mxu0
        %v1417 = vadd.f32 %v685, %v1416
        %1418 = vmatmul.bf16.gmra.mxu0 %v577
        %v1419 = vpop.f32.mrf.mxu0
        %v1420 = vadd.f32 %v685, %v1419
        %v1421 = vpop.f32.mrf.mxu0
        %v1422 = vadd.f32 %v685, %v1421
        %1423 = vmatmul.bf16.gmra.mxu0 %v579
        %v1424 = vpop.f32.mrf.mxu0
        %v1425 = vadd.f32 %v685, %v1424
        %v1426 = vpop.f32.mrf.mxu0
        %v1427 = vadd.f32 %v685, %v1426
        %1428 = vmatmul.bf16.gmra.mxu0 %v581
        %v1429 = vpop.f32.mrf.mxu0
        %v1430 = vadd.f32 %v685, %v1429
        %v1431 = vpop.f32.mrf.mxu0
        %v1432 = vadd.f32 %v685, %v1431
        %1433 = vdwg.mxu0
        %1434 = vmatpush.bf16.msra.mxu0 %v1075
        %1435 = vmatpush.bf16.msra.mxu0 %v1069
        %1436 = vmatpush.bf16.msra.mxu0 %v1063
        %1437 = vmatpush.bf16.msra.mxu0 %v1057
        %1438 = vmatpush.bf16.msra.mxu0 %v1051
        %1439 = vmatpush.bf16.msra.mxu0 %v1045
        %1440 = vmatpush.bf16.msra.mxu0 %v1039
        %1441 = vmatpush.bf16.msra.mxu0 %v1033
        %1442 = vmatmul.bf16.gmra.mxu0 %v576
        %v1443 = vpop.f32.mrf.mxu0
        %v1444 = vadd.f32 %v1415, %v1443
        %v1445 = vpop.f32.mrf.mxu0
        %v1446 = vadd.f32 %v1417, %v1445
        %1447 = vmatmul.bf16.gmra.mxu0 %v578
        %v1448 = vpop.f32.mrf.mxu0
        %v1449 = vadd.f32 %v1420, %v1448
        %v1450 = vpop.f32.mrf.mxu0
        %v1451 = vadd.f32 %v1422, %v1450
        %1452 = vmatmul.bf16.gmra.mxu0 %v580
        %v1453 = vpop.f32.mrf.mxu0
        %v1454 = vadd.f32 %v1425, %v1453
        %v1455 = vpop.f32.mrf.mxu0
        %v1456 = vadd.f32 %v1427, %v1455
        %1457 = vmatmul.bf16.gmra.mxu0 %v582
        %v1458 = vpop.f32.mrf.mxu0
        %v1459 = vadd.f32 %v1430, %v1458
        %v1460 = vpop.f32.mrf.mxu0
        %v1461 = vadd.f32 %v1432, %v1460
        %1462 = vdwg.mxu0
        %1463 = vmatpush.bf16.msra.mxu0 %v1028
        %1464 = vmatpush.bf16.msra.mxu0 %v1022
        %1465 = vmatpush.bf16.msra.mxu0 %v1016
        %1466 = vmatpush.bf16.msra.mxu0 %v1010
        %1467 = vmatpush.bf16.msra.mxu0 %v1004
        %1468 = vmatpush.bf16.msra.mxu0 %v998
        %1469 = vmatpush.bf16.msra.mxu0 %v992
        %1470 = vmatpush.bf16.msra.mxu0 %v986
        %1471 = vmatmul.bf16.gmra.mxu0 %v575
        %v1472 = vpop.f32.mrf.mxu0
        %v1473 = vadd.f32 %v686, %v1472
        %v1474 = vpop.f32.mrf.mxu0
        %v1475 = vadd.f32 %v686, %v1474
        %1476 = vmatmul.bf16.gmra.mxu0 %v577
        %v1477 = vpop.f32.mrf.mxu0
        %v1478 = vadd.f32 %v686, %v1477
        %v1479 = vpop.f32.mrf.mxu0
        %v1480 = vadd.f32 %v686, %v1479
        %1481 = vmatmul.bf16.gmra.mxu0 %v579
        %v1482 = vpop.f32.mrf.mxu0
        %v1483 = vadd.f32 %v686, %v1482
        %v1484 = vpop.f32.mrf.mxu0
        %v1485 = vadd.f32 %v686, %v1484
        %1486 = vmatmul.bf16.gmra.mxu0 %v581
        %v1487 = vpop.f32.mrf.mxu0
        %v1488 = vadd.f32 %v686, %v1487
        %v1489 = vpop.f32.mrf.mxu0
        %v1490 = vadd.f32 %v686, %v1489
        %1491 = vdwg.mxu0
        %1492 = vmatpush.bf16.msra.mxu0 %v1076
        %1493 = vmatpush.bf16.msra.mxu0 %v1070
        %1494 = vmatpush.bf16.msra.mxu0 %v1064
        %1495 = vmatpush.bf16.msra.mxu0 %v1058
        %1496 = vmatpush.bf16.msra.mxu0 %v1052
        %1497 = vmatpush.bf16.msra.mxu0 %v1046
        %1498 = vmatpush.bf16.msra.mxu0 %v1040
        %1499 = vmatpush.bf16.msra.mxu0 %v1034
        %1500 = vmatmul.bf16.gmra.mxu0 %v576
        %v1501 = vpop.f32.mrf.mxu0
        %v1502 = vadd.f32 %v1473, %v1501
        %v1503 = vpop.f32.mrf.mxu0
        %v1504 = vadd.f32 %v1475, %v1503
        %1505 = vmatmul.bf16.gmra.mxu0 %v578
        %v1506 = vpop.f32.mrf.mxu0
        %v1507 = vadd.f32 %v1478, %v1506
        %v1508 = vpop.f32.mrf.mxu0
        %v1509 = vadd.f32 %v1480, %v1508
        %1510 = vmatmul.bf16.gmra.mxu0 %v580
        %v1511 = vpop.f32.mrf.mxu0
        %v1512 = vadd.f32 %v1483, %v1511
        %v1513 = vpop.f32.mrf.mxu0
        %v1514 = vadd.f32 %v1485, %v1513
        %1515 = vmatmul.bf16.gmra.mxu0 %v582
        %v1516 = vpop.f32.mrf.mxu0
        %v1517 = vadd.f32 %v1488, %v1516
        %v1518 = vpop.f32.mrf.mxu0
        %v1519 = vadd.f32 %v1490, %v1518
        %1520 = vdwg.mxu0
        %v1521 = vpack.c.bf16 %v1270, %v1212
        %v1522 = vpack.c.bf16 %v1386, %v1328
        %v1523 = vpack.c.bf16 %v1502, %v1444
        %v1524 = vpack.c.bf16 %v1272, %v1214
        %v1525 = vpack.c.bf16 %v1388, %v1330
        %v1526 = vpack.c.bf16 %v1504, %v1446
        %v1527 = vpack.c.bf16 %v1275, %v1217
        %v1528 = vpack.c.bf16 %v1391, %v1333
        %v1529 = vpack.c.bf16 %v1507, %v1449
        %v1530 = vpack.c.bf16 %v1277, %v1219
        %v1531 = vpack.c.bf16 %v1393, %v1335
        %v1532 = vpack.c.bf16 %v1509, %v1451
        %v1533 = vpack.c.bf16 %v1280, %v1222
        %v1534 = vpack.c.bf16 %v1396, %v1338
        %v1535 = vpack.c.bf16 %v1512, %v1454
        %v1536 = vpack.c.bf16 %v1282, %v1224
        %v1537 = vpack.c.bf16 %v1398, %v1340
        %v1538 = vpack.c.bf16 %v1514, %v1456
        %v1539 = vpack.c.bf16 %v1285, %v1227
        %v1540 = vpack.c.bf16 %v1401, %v1343
        %v1541 = vpack.c.bf16 %v1517, %v1459
        %v1542 = vpack.c.bf16 %v1287, %v1229
        %v1543 = vpack.c.bf16 %v1403, %v1345
        %v1544 = vpack.c.bf16 %v1519, %v1461
        %1545 = vst [vmem:[%s305] sm:$0xff] %v1521
        %1546 = vst [vmem:[%s305 + $0x8] sm:$0xff] %v1522
        %1547 = vst [vmem:[%s305 + $0x10] sm:$0xff] %v1523
        %1548 = vst [vmem:[%s305 + $0x18] sm:$0xff] %v1524
        %1549 = vst [vmem:[%s305 + $0x20] sm:$0xff] %v1525
        %1550 = vst [vmem:[%s305 + $0x28] sm:$0xff] %v1526
        %1551 = vst [vmem:[%s305 + $0x30] sm:$0xff] %v1527
        %1552 = vst [vmem:[%s305 + $0x38] sm:$0xff] %v1528
        %1553 = vst [vmem:[%s305 + $0x40] sm:$0xff] %v1529
        %1554 = vst [vmem:[%s305 + $0x48] sm:$0xff] %v1530
        %1555 = vst [vmem:[%s305 + $0x50] sm:$0xff] %v1531
        %1556 = vst [vmem:[%s305 + $0x58] sm:$0xff] %v1532
        %1557 = vst [vmem:[%s305 + $0x60] sm:$0xff] %v1533
        %1558 = vst [vmem:[%s305 + $0x68] sm:$0xff] %v1534
        %1559 = vst [vmem:[%s305 + $0x70] sm:$0xff] %v1535
        %1560 = vst [vmem:[%s305 + $0x78] sm:$0xff] %v1536
        %1561 = vst [vmem:[%s305 + $0x80] sm:$0xff] %v1537
        %1562 = vst [vmem:[%s305 + $0x88] sm:$0xff] %v1538
        %1563 = vst [vmem:[%s305 + $0x90] sm:$0xff] %v1539
        %1564 = vst [vmem:[%s305 + $0x98] sm:$0xff] %v1540
        %1565 = vst [vmem:[%s305 + $0xa0] sm:$0xff] %v1541
        %1566 = vst [vmem:[%s305 + $0xa8] sm:$0xff] %v1542
        %1567 = vst [vmem:[%s305 + $0xb0] sm:$0xff] %v1543
        %1568 = vst [vmem:[%s305 + $0xb8] sm:$0xff] %v1544
        %s1569 = sand.u32 %s142, 1
        %s1570 = scalar_lea.sflag [#allocation4], %s1569
        %s1571 = sand.u32 %s142, 1
        %s1572 = smul.addr %s1571, 192
        %s1573 = scalar_lea.vmem [#allocation11], %s1572
        // Predicated region
        $region61: #{tpu_custom_call.1} parent=39 // pred_check
          %p1574 = pneg %p152
        $region62: #{tpu_custom_call.1} parent=39 // pred_check_branch
          %1576 = sbr.rel (%p1574) target = $region64
        $region63: #{tpu_custom_call.1} parent=39 // pred_region
          %s1577 = smul.u32 8, %s24
          %1579 = vsyncadd %s1570, 0
          %s1580 = smul.addr %s1577, 6
          %s1581 = smul.addr %s1580, 4
          %s1582 = scalar_lea.hbm %s5, %s1581
          %s1583 = sshll.u32 %s1573, 4
          %s1584 = int_to_ptr.vmem [resolvable:$true] %s1583
          %s1585 = sshll.u32 %s1582, 4
          %s1586 = int_to_ptr.hbm [resolvable:$true] %s1585
          %1591 = dma.vmem_to_hbm [thread:$0]  %s1584, 3072, %s1586, %s1570, 384, 384, 24
        $region64: #{tpu_custom_call.1} parent=39 // pred_fallthru
          _
      $region40: #{tpu_custom_call.1} parent=5 // pred_fallthru
        _
      %p1592 = scmp.le.s32.totalorder 2, %s19
      // Predicated region
      $region65: #{tpu_custom_call.1} parent=5 // pred_check
        %p1593 = pneg %p1592
      $region66: #{tpu_custom_call.1} parent=5 // pred_check_branch
        %1595 = sbr.rel (%p1593) target = $region68
      $region67: #{tpu_custom_call.1} parent=5 // pred_region
        %s1596 = ssub.s32 %s19, 2
        // Predicated region
        $region69: #{tpu_custom_call.1} parent=67 // pred_check
          %p1597 = pneg %p158
        $region70: #{tpu_custom_call.1} parent=67 // pred_check_branch
          %1599 = sbr.rel (%p1597) target = $region72
        $region71: #{tpu_custom_call.1} parent=67 // pred_region
          %s1600 = sand.u32 %s143, 1
          %s1601 = scalar_lea.sflag [#allocation4], %s1600
          %s1602 = sand.u32 %s143, 1
          %s1603 = smul.addr %s1602, 192
          %s1604 = scalar_lea.vmem [#allocation11], %s1603
          %1606 = dma.done %s1601, 3072
        $region72: #{tpu_custom_call.1} parent=67 // pred_fallthru
          _
      $region68: #{tpu_custom_call.1} parent=5 // pred_fallthru
        _
    $region6: #{tpu_custom_call.1} parent=1 // loop_footer
      %s23 = sadd.s32 1, %s19
    $region7: #{tpu_custom_call.1} parent=1 // loop_footer_branch
      %18 = sbr.rel target = $region3
    $region8: #{tpu_custom_call.1} parent=1 // loop_exit
      _
    %1607 = vsyncpa [#allocation3], 1
    %s1608 = scalar_lea.sflag [#allocation3], 1
    %1609 = vsyncpa %s1608, 1
    %1610 = vsyncpa [#allocation6], 1
    %1611 = vsyncpa [#allocation9], 1
    %1612 = vsyncpa [#allocation4], 1
    %s1613 = scalar_lea.sflag [#allocation4], 1
    %1614 = vsyncpa %s1613, 1

</llo_original>
